<compile_context>
chip_gen: v6e
topology: v6e:2x2x1
jax: 0.10.0
libtpu: 0.0.40
codegen_flags: <defaults>
</compile_context>

<pallas_src>
import functools

import jax
import jax.numpy as jnp
from jax import lax
from jax.experimental import pallas as pl
from jax.experimental.pallas import tpu as pltpu

VOXEL_FEAT_DIM = 96
POINT_FEAT_DIM = 32
INPUT_DIM = VOXEL_FEAT_DIM + POINT_FEAT_DIM   # 128
HIDDEN = 32
OUT_DIM = 3
OUT_PAD = 8          # pad the 3 output channels to a full sublane group
BN_EPS = 1e-5


def _round_up(x, m):
    return ((x + m - 1) // m) * m


# ---------------------------------------------------------------------------
# Pass 1: h^T = W1v^T @ v^T + W1p^T @ p^T   (lane-dense (32, N) store)
#         + masked per-channel sum / sum-of-squares for BatchNorm statistics.
# ---------------------------------------------------------------------------
def _pass1_kernel(v_ref, p_ref, w1vt_ref, w1pt_ref,
                  ht_ref, sum_ref, sumsq_ref, *, n_points, block_m):
    @pl.when(pl.program_id(0) == 0)
    def _init():
        sum_ref[...] = jnp.zeros_like(sum_ref)
        sumsq_ref[...] = jnp.zeros_like(sumsq_ref)

    # (HIDDEN, 96) x (block_m, 96)^T -> (HIDDEN, block_m): points on lanes.
    ht = lax.dot_general(w1vt_ref[...], v_ref[...],
                         dimension_numbers=(((1,), (1,)), ((), ())),
                         preferred_element_type=jnp.float32)
    ht = ht + lax.dot_general(w1pt_ref[...], p_ref[...],
                              dimension_numbers=(((1,), (1,)), ((), ())),
                              preferred_element_type=jnp.float32)
    ht_ref[...] = ht.astype(ht_ref.dtype)

    # BatchNorm batch statistics (biased). The ragged last tile is masked
    # in-kernel (no host-side padding copy); garbage from the edge block's
    # undefined columns is excluded exactly.
    col = (pl.program_id(0) * block_m
           + lax.broadcasted_iota(jnp.int32, (1, block_m), 1))
    valid = col < n_points
    hm = jnp.where(valid, ht, 0.0)
    sum_ref[...] += jnp.sum(hm, axis=1, keepdims=True)
    sumsq_ref[...] += jnp.sum(hm * hm, axis=1, keepdims=True)


# ---------------------------------------------------------------------------
# Pass 2: BN scale/shift (computed in-kernel from the pass-1 sums) + ReLU +
#         second Linear, emitted as a lane-dense (8, N) slab.
# ---------------------------------------------------------------------------
def _pass2_kernel(ht_ref, sum_ref, sumsq_ref, gamma_ref, beta_ref,
                  w2t_ref, b2_ref, o_ref, *, n_points):
    inv_n = 1.0 / float(n_points)
    mean = sum_ref[...] * inv_n                                  # (HIDDEN, 1)
    var = jnp.maximum(sumsq_ref[...] * inv_n - mean * mean, 0.0)
    scale = gamma_ref[...] * lax.rsqrt(var + BN_EPS)
    shift = beta_ref[...] - mean * scale                         # (b1 cancelled)

    y = jnp.maximum(ht_ref[...] * scale + shift, 0.0)            # (HIDDEN, tile)
    ot = jnp.dot(w2t_ref[...], y, preferred_element_type=jnp.float32)
    o_ref[...] = (ot + b2_ref[...]).astype(o_ref.dtype)


def _point_head_mlp(params, v2p_feat, point_feat, *, block_m, block_m2):
    """PPmodel_flow on split features v2p:(N,96), point:(N,32) -> (N,3)."""
    w1, b1, gamma, beta, w2, b2 = params
    del b1  # cancelled exactly by training-mode BatchNorm mean subtraction

    n = v2p_feat.shape[0]
    # Clamp tiles for small N (keeps VMEM / wasted lanes small in tests).
    block_m = min(block_m, _round_up(n, 128))
    block_m2 = min(block_m2, _round_up(n, 128))
    assert block_m % 128 == 0 and block_m2 % 128 == 0

    grid1 = (pl.cdiv(n, block_m),)
    grid2 = (pl.cdiv(n, block_m2),)

    w1vt = w1[:VOXEL_FEAT_DIM].T          # (32, 96)
    w1pt = w1[VOXEL_FEAT_DIM:].T          # (32, 32)

    ht, h_sum, h_sumsq = pl.pallas_call(
        functools.partial(_pass1_kernel, n_points=n, block_m=block_m),
        out_shape=(
            jax.ShapeDtypeStruct((HIDDEN, n), jnp.float32),
            jax.ShapeDtypeStruct((HIDDEN, 1), jnp.float32),
            jax.ShapeDtypeStruct((HIDDEN, 1), jnp.float32),
        ),
        grid=grid1,
        in_specs=[
            pl.BlockSpec((block_m, VOXEL_FEAT_DIM), lambda i: (i, 0)),
            pl.BlockSpec((block_m, POINT_FEAT_DIM), lambda i: (i, 0)),
            # Parameters: constant block index -> resident across tiles.
            pl.BlockSpec((HIDDEN, VOXEL_FEAT_DIM), lambda i: (0, 0)),
            pl.BlockSpec((HIDDEN, POINT_FEAT_DIM), lambda i: (0, 0)),
        ],
        out_specs=(
            pl.BlockSpec((HIDDEN, block_m), lambda i: (0, i)),
            pl.BlockSpec((HIDDEN, 1), lambda i: (0, 0)),
            pl.BlockSpec((HIDDEN, 1), lambda i: (0, 0)),
        ),
        compiler_params=pltpu.CompilerParams(
            dimension_semantics=("arbitrary",)),   # BN stats reduce over tiles
    )(v2p_feat, point_feat, w1vt, w1pt)

    gamma_c = gamma.reshape(HIDDEN, 1)
    beta_c = beta.reshape(HIDDEN, 1)
    w2t = jnp.zeros((OUT_PAD, HIDDEN), jnp.float32).at[:OUT_DIM].set(w2.T)
    b2c = jnp.zeros((OUT_PAD, 1), jnp.float32).at[:OUT_DIM].set(
        b2.reshape(OUT_DIM, 1))

    out_t = pl.pallas_call(
        functools.partial(_pass2_kernel, n_points=n),
        out_shape=jax.ShapeDtypeStruct((OUT_PAD, n), jnp.float32),
        grid=grid2,
        in_specs=[
            pl.BlockSpec((HIDDEN, block_m2), lambda j: (0, j)),
            pl.BlockSpec((HIDDEN, 1), lambda j: (0, 0)),
            pl.BlockSpec((HIDDEN, 1), lambda j: (0, 0)),
            pl.BlockSpec((HIDDEN, 1), lambda j: (0, 0)),
            pl.BlockSpec((HIDDEN, 1), lambda j: (0, 0)),
            pl.BlockSpec((OUT_PAD, HIDDEN), lambda j: (0, 0)),
            pl.BlockSpec((OUT_PAD, 1), lambda j: (0, 0)),
        ],
        out_specs=pl.BlockSpec((OUT_PAD, block_m2), lambda j: (0, j)),
        compiler_params=pltpu.CompilerParams(
            dimension_semantics=("parallel",)),    # v7x: shards over 2 TCs
    )(ht, h_sum, h_sumsq, gamma_c, beta_c, w2t, b2c)

    return out_t[:OUT_DIM, :].T                    # (N, 3)


@functools.partial(jax.jit, static_argnames=("block_m", "block_m2"))
def point_head_forward_single(params, voxel_feat_cl, voxel_coords, point_feat,
                              block_m=4096, block_m2=16384):
    """Point_head.forward_single for one batch element.

    voxel_feat_cl: (Z, Y, X, C) channels-last dense voxel features.
    voxel_coords:  (N, 3) int32 with columns (x, y, z).
    point_feat:    (N, 32) float32.
    """
    Z, Y, X, C = voxel_feat_cl.shape
    xs = voxel_coords[:, 0].astype(jnp.int32)
    ys = voxel_coords[:, 1].astype(jnp.int32)
    zs = voxel_coords[:, 2].astype(jnp.int32)
    # Channels-last row gather: 96 contiguous floats per point, no transpose.
    # NOTE: jnp.take clips out-of-range indices under jit (PyTorch would error).
    flat = voxel_feat_cl.reshape(Z * Y * X, C)
    v2p = jnp.take(flat, (zs * Y + ys) * X + xs, axis=0)     # (N, 96)
    return _point_head_mlp(params, v2p, point_feat,
                           block_m=block_m, block_m2=block_m2)


def point_head_forward(params, voxel_feats, voxelizer_infos, pc0_point_feats_lst,
                       block_m=4096, block_m2=16384):
    """Equivalent of Point_head.forward.  voxel_feats: (B, C, Z, Y, X)."""
    # One channels-first -> channels-last transpose for the whole batch so the
    # per-point gather reads contiguous rows.
    voxel_feats_cl = jnp.transpose(voxel_feats, (0, 2, 3, 4, 1))
    flow_outputs = []
    for batch_idx, info in enumerate(voxelizer_infos):
        flow_outputs.append(point_head_forward_single(
            params,
            voxel_feats_cl[batch_idx],
            info["voxel_coords"],
            pc0_point_feats_lst[batch_idx],
            block_m=block_m,
            block_m2=block_m2,
        ))
    return flow_outputs


def init_params(key):
    """Deterministic synthetic parameters for PPmodel_flow."""
    k1, k2, k3, k4 = jax.random.split(key, 4)
    w1 = jax.random.normal(k1, (INPUT_DIM, HIDDEN), jnp.float32) * 0.05
    b1 = jax.random.normal(k2, (1, HIDDEN), jnp.float32) * 0.05
    gamma = jnp.ones((1, HIDDEN), jnp.float32)    # BatchNorm1d weight init
    beta = jnp.zeros((1, HIDDEN), jnp.float32)    # BatchNorm1d bias init
    w2 = jax.random.normal(k3, (HIDDEN, OUT_DIM), jnp.float32) * 0.05
    b2 = jax.random.normal(k4, (1, OUT_DIM), jnp.float32) * 0.05
    return (w1, b1, gamma, beta, w2, b2)


def _reference_forward_single(params, voxel_feat, voxel_coords, point_feat):
    """Pure-JAX reference of the PyTorch module (training-mode BatchNorm)."""
    w1, b1, gamma, beta, w2, b2 = params
    v2p = voxel_feat[:, voxel_coords[:, 2], voxel_coords[:, 1],
                     voxel_coords[:, 0]].T
    x = jnp.concatenate([v2p, point_feat], axis=-1)
    h = x @ w1 + b1
    mean = jnp.mean(h, axis=0, keepdims=True)
    var = jnp.mean((h - mean) ** 2, axis=0, keepdims=True)
    y = gamma * (h - mean) / jnp.sqrt(var + BN_EPS) + beta
    y = jnp.maximum(y, 0.0)
    return y @ w2 + b2


if __name__ == "__main__":
    key = jax.random.PRNGKey(0)
    k_params, k_voxel, k_b0, k_b1 = jax.random.split(key, 4)

    params = init_params(k_params)

    # Small synthetic scene: batch=2, dense grid (C=96, Z=8, Y=16, X=16),
    # non-tile-multiple point counts so the multi-tile path, the ragged edge
    # blocks and the masked BN-statistics accumulation are all exercised.
    B, C, Z, Y, X = 2, VOXEL_FEAT_DIM, 8, 16, 16
    Ns = (1200, 704)
    voxel_feats = jax.random.normal(k_voxel, (B, C, Z, Y, X), jnp.float32)

    voxelizer_infos = []
    pc0_point_feats_lst = []
    for n_pts, kb in zip(Ns, (k_b0, k_b1)):
        kx, ky, kz, kp = jax.random.split(kb, 4)
        coords = jnp.stack(
            [
                jax.random.randint(kx, (n_pts,), 0, X),
                jax.random.randint(ky, (n_pts,), 0, Y),
                jax.random.randint(kz, (n_pts,), 0, Z),
            ],
            axis=1,
        ).astype(jnp.int32)
        voxelizer_infos.append({"voxel_coords": coords})
        pc0_point_feats_lst.append(
            jax.random.normal(kp, (n_pts, POINT_FEAT_DIM), jnp.float32)
        )

    # Small tiles here so the grid has several steps (multi-tile accumulation,
    # ragged last tile, bigger pass-2 tile). Production default is 4096/16384.
    flows = point_head_forward(params, voxel_feats, voxelizer_infos,
                               pc0_point_feats_lst, block_m=256, block_m2=512)

    for batch_idx, (n_pts, info, pfeat, flow) in enumerate(
            zip(Ns, voxelizer_infos, pc0_point_feats_lst, flows)):
        flow = jax.block_until_ready(flow)
        assert flow.shape == (n_pts, OUT_DIM)
        assert flow.dtype == jnp.float32
        assert bool(jnp.all(jnp.isfinite(flow)))
        ref = _reference_forward_single(params, voxel_feats[batch_idx],
                                        info["voxel_coords"], pfeat)
        assert bool(jnp.allclose(flow, ref, atol=2e-3, rtol=2e-3))

    print("KERNEL_OK")
</pallas_src>

<mosaic_0001>
module attributes {stable_mosaic.version = 11 : i64} {
  func.func @_pass1_kernel(%arg0: i32, %arg1: memref<256x96xf32, #tpu.memory_space<vmem>>, %arg2: memref<256x32xf32, #tpu.memory_space<vmem>>, %arg3: memref<32x96xf32, #tpu.memory_space<vmem>>, %arg4: memref<32x32xf32, #tpu.memory_space<vmem>>, %arg5: memref<32x256xf32, #tpu.memory_space<vmem>>, %arg6: memref<32x1xf32, #tpu.memory_space<vmem>>, %arg7: memref<32x1xf32, #tpu.memory_space<vmem>>) attributes {dimension_semantics = [#tpu.dimension_semantics<arbitrary>], iteration_bounds = array<i64: 5>, scalar_prefetch = 0 : i64, scratch_operands = 0 : i64, tpu.core_type = #tpu.core_type<tc>, window_params = [{transform_indices = @transform_0, window_bounds = array<i64: 256, 96>}, {transform_indices = @transform_1, window_bounds = array<i64: 256, 32>}, {pipeline_mode = #tpu.pipeline_mode<synchronous>, transform_indices = @transform_2, window_bounds = array<i64: 32, 96>}, {pipeline_mode = #tpu.pipeline_mode<synchronous>, transform_indices = @transform_3, window_bounds = array<i64: 32, 32>}, {transform_indices = @transform_4, window_bounds = array<i64: 32, 256>}, {pipeline_mode = #tpu.pipeline_mode<synchronous>, transform_indices = @transform_5, window_bounds = array<i64: 32, 1>}, {pipeline_mode = #tpu.pipeline_mode<synchronous>, transform_indices = @transform_6, window_bounds = array<i64: 32, 1>}]} {
    %c0_i32 = arith.constant 0 : i32
    %0 = arith.cmpi eq, %arg0, %c0_i32 : i32
    %1 = arith.extui %0 : i1 to i32
    %c0_i32_0 = arith.constant 0 : i32
    %2 = arith.cmpi ne, %1, %c0_i32_0 : i32
    scf.if %2 {
      %cst_22 = arith.constant 0.000000e+00 : f32
      %32 = vector.broadcast %cst_22 : f32 to vector<32x1xf32>
      %c0_23 = arith.constant 0 : index
      %c0_24 = arith.constant 0 : index
      %33 = vector.load %arg6[%c0_23, %c0_24] : memref<32x1xf32, #tpu.memory_space<vmem>>, vector<32x1xf32>
      tpu.vector_store %arg6[%c0_23, %c0_24], %32 {strides = array<i32>} : memref<32x1xf32, #tpu.memory_space<vmem>>, vector<32x1xf32>,
      %cst_25 = arith.constant 0.000000e+00 : f32
      %34 = vector.broadcast %cst_25 : f32 to vector<32x1xf32>
      %c0_26 = arith.constant 0 : index
      %c0_27 = arith.constant 0 : index
      %35 = vector.load %arg7[%c0_26, %c0_27] : memref<32x1xf32, #tpu.memory_space<vmem>>, vector<32x1xf32>
      tpu.vector_store %arg7[%c0_26, %c0_27], %34 {strides = array<i32>} : memref<32x1xf32, #tpu.memory_space<vmem>>, vector<32x1xf32>,
    } else {
    }
    %c0 = arith.constant 0 : index
    %c0_1 = arith.constant 0 : index
    %3 = vector.load %arg3[%c0, %c0_1] : memref<32x96xf32, #tpu.memory_space<vmem>>, vector<32x96xf32>
    %c0_2 = arith.constant 0 : index
    %c0_3 = arith.constant 0 : index
    %4 = vector.load %arg1[%c0_2, %c0_3] : memref<256x96xf32, #tpu.memory_space<vmem>>, vector<256x96xf32>
    %cst = arith.constant dense<0.000000e+00> : vector<32x256xf32>
    %5 = tpu.matmul %3, %4, %cst {dimension_numbers = #tpu.dot_dimension_numbers<[1], [1], [0], [0], [0, 0, 1, 0], [], []>} : vector<32x96xf32>, vector<256x96xf32>, vector<32x256xf32> -> vector<32x256xf32>
    %c0_4 = arith.constant 0 : index
    %c0_5 = arith.constant 0 : index
    %6 = vector.load %arg4[%c0_4, %c0_5] : memref<32x32xf32, #tpu.memory_space<vmem>>, vector<32x32xf32>
    %c0_6 = arith.constant 0 : index
    %c0_7 = arith.constant 0 : index
    %7 = vector.load %arg2[%c0_6, %c0_7] : memref<256x32xf32, #tpu.memory_space<vmem>>, vector<256x32xf32>
    %cst_8 = arith.constant dense<0.000000e+00> : vector<32x256xf32>
    %8 = tpu.matmul %6, %7, %cst_8 {dimension_numbers = #tpu.dot_dimension_numbers<[1], [1], [0], [0], [0, 0, 1, 0], [], []>} : vector<32x32xf32>, vector<256x32xf32>, vector<32x256xf32> -> vector<32x256xf32>
    %9 = arith.addf %5, %8 : vector<32x256xf32>
    %c0_9 = arith.constant 0 : index
    %c0_10 = arith.constant 0 : index
    %10 = vector.load %arg5[%c0_9, %c0_10] : memref<32x256xf32, #tpu.memory_space<vmem>>, vector<32x256xf32>
    tpu.vector_store %arg5[%c0_9, %c0_10], %9 {strides = array<i32>} : memref<32x256xf32, #tpu.memory_space<vmem>>, vector<32x256xf32>,
    %c256_i32 = arith.constant 256 : i32
    %11 = arith.muli %arg0, %c256_i32 : i32
    %12 = tpu.iota {dimensions = array<i32: 1>} : vector<1x256xi32>
    %13 = vector.broadcast %11 : i32 to vector<1x256xi32>
    %14 = arith.addi %13, %12 : vector<1x256xi32>
    %c1200_i32 = arith.constant 1200 : i32
    %15 = vector.broadcast %c1200_i32 : i32 to vector<1x256xi32>
    %16 = arith.cmpi slt, %14, %15 : vector<1x256xi32>
    %cst_11 = arith.constant 0.000000e+00 : f32
    %17 = vector.shape_cast %16 : vector<1x256xi1> to vector<1x256xi1>
    %18 = vector.broadcast %17 : vector<1x256xi1> to vector<32x256xi1>
    %19 = vector.broadcast %cst_11 : f32 to vector<32x256xf32>
    %20 = arith.select %18, %9, %19 : vector<32x256xi1>, vector<32x256xf32>
    %c0_12 = arith.constant 0 : index
    %c0_13 = arith.constant 0 : index
    %21 = vector.load %arg6[%c0_12, %c0_13] : memref<32x1xf32, #tpu.memory_space<vmem>>, vector<32x1xf32>
    %cst_14 = arith.constant dense<0.000000e+00> : vector<32xf32>
    %22 = vector.multi_reduction <add>, %20, %cst_14 [1] : vector<32x256xf32> to vector<32xf32>
    %23 = vector.shape_cast %22 : vector<32xf32> to vector<32x1xf32>
    %24 = arith.addf %21, %23 : vector<32x1xf32>
    %c0_15 = arith.constant 0 : index
    %c0_16 = arith.constant 0 : index
    %25 = vector.load %arg6[%c0_15, %c0_16] : memref<32x1xf32, #tpu.memory_space<vmem>>, vector<32x1xf32>
    tpu.vector_store %arg6[%c0_15, %c0_16], %24 {strides = array<i32>} : memref<32x1xf32, #tpu.memory_space<vmem>>, vector<32x1xf32>,
    %c0_17 = arith.constant 0 : index
    %c0_18 = arith.constant 0 : index
    %26 = vector.load %arg7[%c0_17, %c0_18] : memref<32x1xf32, #tpu.memory_space<vmem>>, vector<32x1xf32>
    %27 = arith.mulf %20, %20 : vector<32x256xf32>
    %cst_19 = arith.constant dense<0.000000e+00> : vector<32xf32>
    %28 = vector.multi_reduction <add>, %27, %cst_19 [1] : vector<32x256xf32> to vector<32xf32>
    %29 = vector.shape_cast %28 : vector<32xf32> to vector<32x1xf32>
    %30 = arith.addf %26, %29 : vector<32x1xf32>
    %c0_20 = arith.constant 0 : index
    %c0_21 = arith.constant 0 : index
    %31 = vector.load %arg7[%c0_20, %c0_21] : memref<32x1xf32, #tpu.memory_space<vmem>>, vector<32x1xf32>
    tpu.vector_store %arg7[%c0_20, %c0_21], %30 {strides = array<i32>} : memref<32x1xf32, #tpu.memory_space<vmem>>, vector<32x1xf32>,
    return
  }
  func.func @transform_0(%arg0: i32) -> (i32, i32) {
    %c0_i32 = arith.constant 0 : i32
    %c0_i32_0 = arith.constant 0 : i32
    return %arg0, %c0_i32 : i32, i32
  }
  func.func @transform_1(%arg0: i32) -> (i32, i32) {
    %c0_i32 = arith.constant 0 : i32
    %c0_i32_0 = arith.constant 0 : i32
    return %arg0, %c0_i32 : i32, i32
  }
  func.func @transform_2(%arg0: i32) -> (i32, i32) {
    %c0_i32 = arith.constant 0 : i32
    %c0_i32_0 = arith.constant 0 : i32
    %c0_i32_1 = arith.constant 0 : i32
    return %c0_i32, %c0_i32_0 : i32, i32
  }
  func.func @transform_3(%arg0: i32) -> (i32, i32) {
    %c0_i32 = arith.constant 0 : i32
    %c0_i32_0 = arith.constant 0 : i32
    %c0_i32_1 = arith.constant 0 : i32
    return %c0_i32, %c0_i32_0 : i32, i32
  }
  func.func @transform_4(%arg0: i32) -> (i32, i32) {
    %c0_i32 = arith.constant 0 : i32
    %c0_i32_0 = arith.constant 0 : i32
    return %c0_i32, %arg0 : i32, i32
  }
  func.func @transform_5(%arg0: i32) -> (i32, i32) {
    %c0_i32 = arith.constant 0 : i32
    %c0_i32_0 = arith.constant 0 : i32
    %c0_i32_1 = arith.constant 0 : i32
    return %c0_i32, %c0_i32_0 : i32, i32
  }
  func.func @transform_6(%arg0: i32) -> (i32, i32) {
    %c0_i32 = arith.constant 0 : i32
    %c0_i32_0 = arith.constant 0 : i32
    %c0_i32_1 = arith.constant 0 : i32
    return %c0_i32, %c0_i32_0 : i32, i32
  }
}

module attributes {stable_mosaic.version = 11 : i64} {
  func.func @_pass2_kernel(%arg0: i32, %arg1: memref<32x512xf32, #tpu.memory_space<vmem>>, %arg2: memref<32x1xf32, #tpu.memory_space<vmem>>, %arg3: memref<32x1xf32, #tpu.memory_space<vmem>>, %arg4: memref<32x1xf32, #tpu.memory_space<vmem>>, %arg5: memref<32x1xf32, #tpu.memory_space<vmem>>, %arg6: memref<8x32xf32, #tpu.memory_space<vmem>>, %arg7: memref<8x1xf32, #tpu.memory_space<vmem>>, %arg8: memref<8x512xf32, #tpu.memory_space<vmem>>) attributes {dimension_semantics = [#tpu.dimension_semantics<parallel>], iteration_bounds = array<i64: 3>, scalar_prefetch = 0 : i64, scratch_operands = 0 : i64, tpu.core_type = #tpu.core_type<tc>, window_params = [{transform_indices = @transform_0, window_bounds = array<i64: 32, 512>}, {pipeline_mode = #tpu.pipeline_mode<synchronous>, transform_indices = @transform_1, window_bounds = array<i64: 32, 1>}, {pipeline_mode = #tpu.pipeline_mode<synchronous>, transform_indices = @transform_2, window_bounds = array<i64: 32, 1>}, {pipeline_mode = #tpu.pipeline_mode<synchronous>, transform_indices = @transform_3, window_bounds = array<i64: 32, 1>}, {pipeline_mode = #tpu.pipeline_mode<synchronous>, transform_indices = @transform_4, window_bounds = array<i64: 32, 1>}, {pipeline_mode = #tpu.pipeline_mode<synchronous>, transform_indices = @transform_5, window_bounds = array<i64: 8, 32>}, {pipeline_mode = #tpu.pipeline_mode<synchronous>, transform_indices = @transform_6, window_bounds = array<i64: 8, 1>}, {transform_indices = @transform_7, window_bounds = array<i64: 8, 512>}]} {
    %c0 = arith.constant 0 : index
    %c0_0 = arith.constant 0 : index
    %0 = vector.load %arg2[%c0, %c0_0] : memref<32x1xf32, #tpu.memory_space<vmem>>, vector<32x1xf32>
    %cst = arith.constant 8.33333353E-4 : f32
    %1 = vector.broadcast %cst : f32 to vector<32x1xf32>
    %2 = arith.mulf %0, %1 : vector<32x1xf32>
    %c0_1 = arith.constant 0 : index
    %c0_2 = arith.constant 0 : index
    %3 = vector.load %arg3[%c0_1, %c0_2] : memref<32x1xf32, #tpu.memory_space<vmem>>, vector<32x1xf32>
    %cst_3 = arith.constant 8.33333353E-4 : f32
    %4 = vector.broadcast %cst_3 : f32 to vector<32x1xf32>
    %5 = arith.mulf %3, %4 : vector<32x1xf32>
    %6 = arith.mulf %2, %2 : vector<32x1xf32>
    %7 = arith.subf %5, %6 : vector<32x1xf32>
    %cst_4 = arith.constant 0.000000e+00 : f32
    %8 = vector.broadcast %cst_4 : f32 to vector<32x1xf32>
    %9 = arith.maximumf %7, %8 : vector<32x1xf32>
    %c0_5 = arith.constant 0 : index
    %c0_6 = arith.constant 0 : index
    %10 = vector.load %arg4[%c0_5, %c0_6] : memref<32x1xf32, #tpu.memory_space<vmem>>, vector<32x1xf32>
    %cst_7 = arith.constant 9.99999974E-6 : f32
    %11 = vector.broadcast %cst_7 : f32 to vector<32x1xf32>
    %12 = arith.addf %9, %11 : vector<32x1xf32>
    %13 = math.rsqrt %12 : vector<32x1xf32>
    %14 = arith.mulf %10, %13 : vector<32x1xf32>
    %c0_8 = arith.constant 0 : index
    %c0_9 = arith.constant 0 : index
    %15 = vector.load %arg5[%c0_8, %c0_9] : memref<32x1xf32, #tpu.memory_space<vmem>>, vector<32x1xf32>
    %16 = arith.mulf %2, %14 : vector<32x1xf32>
    %17 = arith.subf %15, %16 : vector<32x1xf32>
    %c0_10 = arith.constant 0 : index
    %c0_11 = arith.constant 0 : index
    %18 = vector.load %arg1[%c0_10, %c0_11] : memref<32x512xf32, #tpu.memory_space<vmem>>, vector<32x512xf32>
    %19 = vector.broadcast %14 : vector<32x1xf32> to vector<32x512xf32>
    %20 = arith.mulf %18, %19 : vector<32x512xf32>
    %21 = vector.broadcast %17 : vector<32x1xf32> to vector<32x512xf32>
    %22 = arith.addf %20, %21 : vector<32x512xf32>
    %cst_12 = arith.constant 0.000000e+00 : f32
    %23 = vector.broadcast %cst_12 : f32 to vector<32x512xf32>
    %24 = arith.maximumf %22, %23 : vector<32x512xf32>
    %c0_13 = arith.constant 0 : index
    %c0_14 = arith.constant 0 : index
    %25 = vector.load %arg6[%c0_13, %c0_14] : memref<8x32xf32, #tpu.memory_space<vmem>>, vector<8x32xf32>
    %cst_15 = arith.constant dense<0.000000e+00> : vector<8x512xf32>
    %26 = tpu.matmul %25, %24, %cst_15 {dimension_numbers = #tpu.dot_dimension_numbers<[1], [0], [0], [1], [0, 0, 1, 1], [], []>} : vector<8x32xf32>, vector<32x512xf32>, vector<8x512xf32> -> vector<8x512xf32>
    %c0_16 = arith.constant 0 : index
    %c0_17 = arith.constant 0 : index
    %27 = vector.load %arg7[%c0_16, %c0_17] : memref<8x1xf32, #tpu.memory_space<vmem>>, vector<8x1xf32>
    %28 = vector.broadcast %27 : vector<8x1xf32> to vector<8x512xf32>
    %29 = arith.addf %26, %28 : vector<8x512xf32>
    %c0_18 = arith.constant 0 : index
    %c0_19 = arith.constant 0 : index
    %30 = vector.load %arg8[%c0_18, %c0_19] : memref<8x512xf32, #tpu.memory_space<vmem>>, vector<8x512xf32>
    tpu.vector_store %arg8[%c0_18, %c0_19], %29 {strides = array<i32>} : memref<8x512xf32, #tpu.memory_space<vmem>>, vector<8x512xf32>,
    return
  }
  func.func @transform_0(%arg0: i32) -> (i32, i32) {
    %c0_i32 = arith.constant 0 : i32
    %c0_i32_0 = arith.constant 0 : i32
    return %c0_i32, %arg0 : i32, i32
  }
  func.func @transform_1(%arg0: i32) -> (i32, i32) {
    %c0_i32 = arith.constant 0 : i32
    %c0_i32_0 = arith.constant 0 : i32
    %c0_i32_1 = arith.constant 0 : i32
    return %c0_i32, %c0_i32_0 : i32, i32
  }
  func.func @transform_2(%arg0: i32) -> (i32, i32) {
    %c0_i32 = arith.constant 0 : i32
    %c0_i32_0 = arith.constant 0 : i32
    %c0_i32_1 = arith.constant 0 : i32
    return %c0_i32, %c0_i32_0 : i32, i32
  }
  func.func @transform_3(%arg0: i32) -> (i32, i32) {
    %c0_i32 = arith.constant 0 : i32
    %c0_i32_0 = arith.constant 0 : i32
    %c0_i32_1 = arith.constant 0 : i32
    return %c0_i32, %c0_i32_0 : i32, i32
  }
  func.func @transform_4(%arg0: i32) -> (i32, i32) {
    %c0_i32 = arith.constant 0 : i32
    %c0_i32_0 = arith.constant 0 : i32
    %c0_i32_1 = arith.constant 0 : i32
    return %c0_i32, %c0_i32_0 : i32, i32
  }
  func.func @transform_5(%arg0: i32) -> (i32, i32) {
    %c0_i32 = arith.constant 0 : i32
    %c0_i32_0 = arith.constant 0 : i32
    %c0_i32_1 = arith.constant 0 : i32
    return %c0_i32, %c0_i32_0 : i32, i32
  }
  func.func @transform_6(%arg0: i32) -> (i32, i32) {
    %c0_i32 = arith.constant 0 : i32
    %c0_i32_0 = arith.constant 0 : i32
    %c0_i32_1 = arith.constant 0 : i32
    return %c0_i32, %c0_i32_0 : i32, i32
  }
  func.func @transform_7(%arg0: i32) -> (i32, i32) {
    %c0_i32 = arith.constant 0 : i32
    %c0_i32_0 = arith.constant 0 : i32
    return %c0_i32, %arg0 : i32, i32
  }
}

</mosaic_0001>

<llo_original>
// kernel: point_head_forward_single.3
$region0: #{point_head_forward_single.3}
  #allocation0 [shape = 'u32[]', space=smem, size = 0x4, offset = 0x4, fixed_abs, tag = 'smem constant byte address 0x4 - core index']
  #allocation1 [shape = 'u32[144,128]{1,0:T(1,128)}', space=vmem, size = 0x12000, scoped, tag = 'internal scratch']
  %s0 = inlined_call_operand.vmem [shape: f32[32,1200], index: 0, kind: input, shape index: {}]
  %s1 = inlined_call_operand.vmem [shape: f32[32,1], index: 1, kind: input, shape index: {}]
  %s2 = inlined_call_operand.vmem [shape: f32[32,1], index: 2, kind: input, shape index: {}]
  %s3 = inlined_call_operand.vmem [shape: f32[32,1], index: 3, kind: input, shape index: {}]
  %s4 = inlined_call_operand.vmem [shape: f32[32,1], index: 4, kind: input, shape index: {}]
  %s5 = inlined_call_operand.vmem [shape: f32[8,32], index: 5, kind: input, shape index: {}]
  %s6 = inlined_call_operand.vmem [shape: f32[8,1], index: 6, kind: input, shape index: {}]
  %s7 = inlined_call_operand.vmem [shape: f32[8,1200], index: 7, kind: output, shape index: {}]
  %s8 = sld [smem:[#allocation0]]
  $region189: #{point_head_forward_single.3} parent=0
    _
  %s10 = ssub.s32 1, %s8
  %s11 = scalar_select 0, %s10, %s8
  $region1: #{point_head_forward_single.3} parent=0
    #allocation2 [shape = 'u8[131072]{0}', space=vmem, size = 0x20000, scoped, tag = 'input window, operand 0']
    #allocation3 [shape = 'u8[32768]{0}', space=vmem, size = 0x8000, scoped, tag = 'output window, operand 0']
    loop: start=0, step=1, limit=5
    $region2: #{point_head_forward_single.3} parent=1 // loop_pre_header
      _
    $region3: #{point_head_forward_single.3} parent=1 // loop_header
      %s13 = sphi 0, %s17
      %p14 = scmp.ge.s32.totalorder %s13, 5
      %s23 = sphi 0, %s25
      %s26 = sphi 0, %s23
      %s27 = sphi 0, %s26
      %s43 = sphi 0, %s27
      %s47 = sphi 0, %s47
      %s49 = sphi 0, %s47
      %s50 = sphi 0, %s49
      %s64 = sphi 0, %s50
      %s68 = sphi 0, %s68
      %s70 = sphi 0, %s68
      %s71 = sphi 0, %s70
      %s85 = sphi 0, %s71
      %s89 = sphi 0, %s89
      %s91 = sphi 0, %s89
      %s92 = sphi 0, %s91
      %s106 = sphi 0, %s92
      %s110 = sphi 0, %s110
      %s112 = sphi 0, %s110
      %s113 = sphi 0, %s112
      %s127 = sphi 0, %s113
      %s131 = sphi 0, %s131
      %s133 = sphi 0, %s131
      %s134 = sphi 0, %s133
      %s148 = sphi 0, %s134
      %s152 = sphi 0, %s152
      %s154 = sphi 0, %s152
      %s155 = sphi 0, %s154
      %s169 = sphi 0, %s155
      %s175 = sphi 0, %s177
      %s178 = sphi 0, %s175
      %s179 = sphi 0, %s178
      %s195 = sphi 0, %s179
    $region4: #{point_head_forward_single.3} parent=1 // loop_header_branch
      %16 = sbr.rel (%p14) target = $region8
    $region5: #{point_head_forward_single.3} parent=1 // loop_body
      %s18 = ssub.s32 %s13, 1
      %s19 = ssub.s32 %s13, 2
      %s20 = sadd.s32 %s13, 1
      %s21 = ssub.s32 %s13, %s20
      %p22 = scmp.eq.s32.totalorder %s21, 0
      %s24 = sadd.s32 %s23, 1
      %s25 = scalar_select %p22, %s23, %s24
      %p28 = pneg %p22
      %p29 = scmp.eq.s32.totalorder %s13, 2
      %p30 = por %p28, %p29
      %p31 = scmp.ne.s32.totalorder %s23, %s26
      %p32 = scmp.eq.s32.totalorder %s13, 0
      %p33 = por %p31, %p32
      %p34 = scmp.ne.s32.totalorder %s23, %s26
      %p35 = scmp.eq.s32.totalorder %s18, 2
      %p36 = por %p34, %p35
      %p37 = scmp.ne.s32.totalorder %s26, %s27
      %p38 = scmp.eq.s32.totalorder %s18, 0
      %p39 = por %p37, %p38
      %p40 = scmp.ne.s32.totalorder %s26, %s27
      %p41 = scmp.eq.s32.totalorder %s19, 2
      %p42 = por %p40, %p41
      %p44 = scmp.ne.s32.totalorder %s27, %s43
      %p45 = scmp.eq.s32.totalorder %s19, 0
      %p46 = por %p44, %p45
      %s48 = sadd.s32 %s47, 1
      %p51 = scmp.eq.s32.totalorder %s13, 2
      %p52 = scmp.ne.s32.totalorder %s47, %s49
      %p53 = scmp.eq.s32.totalorder %s13, 0
      %p54 = por %p52, %p53
      %p55 = scmp.ne.s32.totalorder %s47, %s49
      %p56 = scmp.eq.s32.totalorder %s18, 2
      %p57 = por %p55, %p56
      %p58 = scmp.ne.s32.totalorder %s49, %s50
      %p59 = scmp.eq.s32.totalorder %s18, 0
      %p60 = por %p58, %p59
      %p61 = scmp.ne.s32.totalorder %s49, %s50
      %p62 = scmp.eq.s32.totalorder %s19, 2
      %p63 = por %p61, %p62
      %p65 = scmp.ne.s32.totalorder %s50, %s64
      %p66 = scmp.eq.s32.totalorder %s19, 0
      %p67 = por %p65, %p66
      %s69 = sadd.s32 %s68, 1
      %p72 = scmp.eq.s32.totalorder %s13, 2
      %p73 = scmp.ne.s32.totalorder %s68, %s70
      %p74 = scmp.eq.s32.totalorder %s13, 0
      %p75 = por %p73, %p74
      %p76 = scmp.ne.s32.totalorder %s68, %s70
      %p77 = scmp.eq.s32.totalorder %s18, 2
      %p78 = por %p76, %p77
      %p79 = scmp.ne.s32.totalorder %s70, %s71
      %p80 = scmp.eq.s32.totalorder %s18, 0
      %p81 = por %p79, %p80
      %p82 = scmp.ne.s32.totalorder %s70, %s71
      %p83 = scmp.eq.s32.totalorder %s19, 2
      %p84 = por %p82, %p83
      %p86 = scmp.ne.s32.totalorder %s71, %s85
      %p87 = scmp.eq.s32.totalorder %s19, 0
      %p88 = por %p86, %p87
      %s90 = sadd.s32 %s89, 1
      %p93 = scmp.eq.s32.totalorder %s13, 2
      %p94 = scmp.ne.s32.totalorder %s89, %s91
      %p95 = scmp.eq.s32.totalorder %s13, 0
      %p96 = por %p94, %p95
      %p97 = scmp.ne.s32.totalorder %s89, %s91
      %p98 = scmp.eq.s32.totalorder %s18, 2
      %p99 = por %p97, %p98
      %p100 = scmp.ne.s32.totalorder %s91, %s92
      %p101 = scmp.eq.s32.totalorder %s18, 0
      %p102 = por %p100, %p101
      %p103 = scmp.ne.s32.totalorder %s91, %s92
      %p104 = scmp.eq.s32.totalorder %s19, 2
      %p105 = por %p103, %p104
      %p107 = scmp.ne.s32.totalorder %s92, %s106
      %p108 = scmp.eq.s32.totalorder %s19, 0
      %p109 = por %p107, %p108
      %s111 = sadd.s32 %s110, 1
      %p114 = scmp.eq.s32.totalorder %s13, 2
      %p115 = scmp.ne.s32.totalorder %s110, %s112
      %p116 = scmp.eq.s32.totalorder %s13, 0
      %p117 = por %p115, %p116
      %p118 = scmp.ne.s32.totalorder %s110, %s112
      %p119 = scmp.eq.s32.totalorder %s18, 2
      %p120 = por %p118, %p119
      %p121 = scmp.ne.s32.totalorder %s112, %s113
      %p122 = scmp.eq.s32.totalorder %s18, 0
      %p123 = por %p121, %p122
      %p124 = scmp.ne.s32.totalorder %s112, %s113
      %p125 = scmp.eq.s32.totalorder %s19, 2
      %p126 = por %p124, %p125
      %p128 = scmp.ne.s32.totalorder %s113, %s127
      %p129 = scmp.eq.s32.totalorder %s19, 0
      %p130 = por %p128, %p129
      %s132 = sadd.s32 %s131, 1
      %p135 = scmp.eq.s32.totalorder %s13, 2
      %p136 = scmp.ne.s32.totalorder %s131, %s133
      %p137 = scmp.eq.s32.totalorder %s13, 0
      %p138 = por %p136, %p137
      %p139 = scmp.ne.s32.totalorder %s131, %s133
      %p140 = scmp.eq.s32.totalorder %s18, 2
      %p141 = por %p139, %p140
      %p142 = scmp.ne.s32.totalorder %s133, %s134
      %p143 = scmp.eq.s32.totalorder %s18, 0
      %p144 = por %p142, %p143
      %p145 = scmp.ne.s32.totalorder %s133, %s134
      %p146 = scmp.eq.s32.totalorder %s19, 2
      %p147 = por %p145, %p146
      %p149 = scmp.ne.s32.totalorder %s134, %s148
      %p150 = scmp.eq.s32.totalorder %s19, 0
      %p151 = por %p149, %p150
      %s153 = sadd.s32 %s152, 1
      %p156 = scmp.eq.s32.totalorder %s13, 2
      %p157 = scmp.ne.s32.totalorder %s152, %s154
      %p158 = scmp.eq.s32.totalorder %s13, 0
      %p159 = por %p157, %p158
      %p160 = scmp.ne.s32.totalorder %s152, %s154
      %p161 = scmp.eq.s32.totalorder %s18, 2
      %p162 = por %p160, %p161
      %p163 = scmp.ne.s32.totalorder %s154, %s155
      %p164 = scmp.eq.s32.totalorder %s18, 0
      %p165 = por %p163, %p164
      %p166 = scmp.ne.s32.totalorder %s154, %s155
      %p167 = scmp.eq.s32.totalorder %s19, 2
      %p168 = por %p166, %p167
      %p170 = scmp.ne.s32.totalorder %s155, %s169
      %p171 = scmp.eq.s32.totalorder %s19, 0
      %p172 = por %p170, %p171
      %s173 = ssub.s32 %s13, %s20
      %p174 = scmp.eq.s32.totalorder %s173, 0
      %s176 = sadd.s32 %s175, 1
      %s177 = scalar_select %p174, %s175, %s176
      %p180 = pneg %p174
      %p181 = scmp.eq.s32.totalorder %s13, 2
      %p182 = por %p180, %p181
      %p183 = scmp.ne.s32.totalorder %s175, %s178
      %p184 = scmp.eq.s32.totalorder %s13, 0
      %p185 = por %p183, %p184
      %p186 = scmp.ne.s32.totalorder %s175, %s178
      %p187 = scmp.eq.s32.totalorder %s18, 2
      %p188 = por %p186, %p187
      %p189 = scmp.ne.s32.totalorder %s178, %s179
      %p190 = scmp.eq.s32.totalorder %s18, 0
      %p191 = por %p189, %p190
      %p192 = scmp.ne.s32.totalorder %s178, %s179
      %p193 = scmp.eq.s32.totalorder %s19, 2
      %p194 = por %p192, %p193
      %p196 = scmp.ne.s32.totalorder %s179, %s195
      %p197 = scmp.eq.s32.totalorder %s19, 0
      %p198 = por %p196, %p197
      %p199 = scmp.le.s32.totalorder 1, %s13
      %p200 = scmp.lt.s32.totalorder %s13, 4
      %p201 = pnand %p199, %p200
      %p202 = pneg %p201
      // Predicated region
      $region9: #{point_head_forward_single.3} parent=5 // pred_check
        _
      $region10: #{point_head_forward_single.3} parent=5 // pred_check_branch
        %204 = sbr.rel (%p201) target = $region12
      $region11: #{point_head_forward_single.3} parent=5 // pred_region
        %s205 = ssub.s32 %s13, 1
        // Predicated region
        $region13: #{point_head_forward_single.3} parent=11 // pred_check
          %p206 = pneg %p60
        $region14: #{point_head_forward_single.3} parent=11 // pred_check_branch
          %208 = sbr.rel (%p206) target = $region16
        $region15: #{point_head_forward_single.3} parent=11 // pred_region
          _
        $region16: #{point_head_forward_single.3} parent=11 // pred_fallthru
          _
        // Predicated region
        $region17: #{point_head_forward_single.3} parent=11 // pred_check
          %p209 = pneg %p81
        $region18: #{point_head_forward_single.3} parent=11 // pred_check_branch
          %211 = sbr.rel (%p209) target = $region20
        $region19: #{point_head_forward_single.3} parent=11 // pred_region
          _
        $region20: #{point_head_forward_single.3} parent=11 // pred_fallthru
          _
        // Predicated region
        $region21: #{point_head_forward_single.3} parent=11 // pred_check
          %p212 = pneg %p102
        $region22: #{point_head_forward_single.3} parent=11 // pred_check_branch
          %214 = sbr.rel (%p212) target = $region24
        $region23: #{point_head_forward_single.3} parent=11 // pred_region
          _
        $region24: #{point_head_forward_single.3} parent=11 // pred_fallthru
          _
        // Predicated region
        $region25: #{point_head_forward_single.3} parent=11 // pred_check
          %p215 = pneg %p123
        $region26: #{point_head_forward_single.3} parent=11 // pred_check_branch
          %217 = sbr.rel (%p215) target = $region28
        $region27: #{point_head_forward_single.3} parent=11 // pred_region
          _
        $region28: #{point_head_forward_single.3} parent=11 // pred_fallthru
          _
        // Predicated region
        $region29: #{point_head_forward_single.3} parent=11 // pred_check
          %p218 = pneg %p144
        $region30: #{point_head_forward_single.3} parent=11 // pred_check_branch
          %220 = sbr.rel (%p218) target = $region32
        $region31: #{point_head_forward_single.3} parent=11 // pred_region
          _
        $region32: #{point_head_forward_single.3} parent=11 // pred_fallthru
          _
        // Predicated region
        $region33: #{point_head_forward_single.3} parent=11 // pred_check
          %p221 = pneg %p165
        $region34: #{point_head_forward_single.3} parent=11 // pred_check_branch
          %223 = sbr.rel (%p221) target = $region36
        $region35: #{point_head_forward_single.3} parent=11 // pred_region
          _
        $region36: #{point_head_forward_single.3} parent=11 // pred_fallthru
          _
      $region12: #{point_head_forward_single.3} parent=5 // pred_fallthru
        _
      %p224 = scmp.lt.s32.totalorder %s13, 3
      // Predicated region
      $region37: #{point_head_forward_single.3} parent=5 // pred_check
        %p225 = pneg %p224
      $region38: #{point_head_forward_single.3} parent=5 // pred_check_branch
        %227 = sbr.rel (%p225) target = $region40
      $region39: #{point_head_forward_single.3} parent=5 // pred_region
        // Predicated region
        $region41: #{point_head_forward_single.3} parent=39 // pred_check
          %p228 = pneg %p33
        $region42: #{point_head_forward_single.3} parent=39 // pred_check_branch
          %230 = sbr.rel (%p228) target = $region44
        $region43: #{point_head_forward_single.3} parent=39 // pred_region
          %s231 = sand.u32 %s23, 1
          %s232 = sand.u32 %s23, 1
          %s233 = smul.addr %s232, 128
          %s234 = scalar_lea.vmem [#allocation2], %s233
          %s235 = smul.u32 4, %s13
          %s236 = ssub.s32 10, %s235
          %p237 = scmp.lt.s32.totalorder %s236, 4
          %s238 = scalar_select %p237, %s236, 4
          %s239 = smul.u32 512, %s238
          %p240 = scmp.ne.s32.totalorder 0, %s239
          %s241 = smul.addr %s235, 8
          %s242 = scalar_lea.vmem %s0, %s241
          %s243 = smul.u32 %s238, 8
          // Predicated region
          $region45: #{point_head_forward_single.3} parent=43 // pred_check
            %p244 = pneg %p240
          $region46: #{point_head_forward_single.3} parent=43 // pred_check_branch
            %246 = sbr.rel (%p244) target = $region48
          $region47: #{point_head_forward_single.3} parent=43 // pred_region
            %p247 = scmp.lt.u32.totalorder %s243, 8
            %p248 = pneg %p247
            // Predicated region
            $region49: #{point_head_forward_single.3} parent=47 // pred_check
              _
            $region50: #{point_head_forward_single.3} parent=47 // pred_check_branch
              %250 = sbr.rel (%p247) target = $region52
            $region51: #{point_head_forward_single.3} parent=47 // pred_region
              %s272 = sand.u32 %s243, 7
              %p273 = scmp.eq.s32.totalorder %s272, 0
              // Predicated region
              $region64: #{point_head_forward_single.3} parent=51 // pred_check
                %p274 = pneg %p273
              $region65: #{point_head_forward_single.3} parent=51 // pred_check_branch
                %276 = sbr.rel (%p274) target = $region67
              $region66: #{point_head_forward_single.3} parent=51 // pred_region
                %s277 = sshrl.u32 %s243, 3
                %s278 = sshrl.u32 %s277, 4
                // While loop
                $region68: #{point_head_forward_single.3} parent=66 // loop_pre_header
                  _
                $region69: #{point_head_forward_single.3} parent=66 // loop_header
                  %s282 = sphi 0, %s284
                  %p283 = scmp.ge.s32.totalorder %s282, %s278
                  %s287 = sphi 0, %s420
                  %s288 = sphi %s242, %s423
                  %s289 = sphi %s234, %s424
                $region70: #{point_head_forward_single.3} parent=66 // loop_header_branch
                  %286 = sbr.rel (%p283) target = $region74
                $region71: #{point_head_forward_single.3} parent=66 // loop_body
                  %v290 = vld [vmem:[%s288] sm:$0xff]
                  %291 = vst [vmem:[%s289] sm:$0xff] %v290
                  %v292 = vld [vmem:[%s288 + $0x8] sm:$0xff]
                  %293 = vst [vmem:[%s289 + $0x8] sm:$0xff] %v292
                  %v294 = vld [vmem:[%s288 + $0x10] sm:$0xff]
                  %295 = vst [vmem:[%s289 + $0x10] sm:$0xff] %v294
                  %v296 = vld [vmem:[%s288 + $0x18] sm:$0xff]
                  %297 = vst [vmem:[%s289 + $0x18] sm:$0xff] %v296
                  %v298 = vld [vmem:[%s288 + $0x20] sm:$0xff]
                  %299 = vst [vmem:[%s289 + $0x20] sm:$0xff] %v298
                  %v300 = vld [vmem:[%s288 + $0x28] sm:$0xff]
                  %301 = vst [vmem:[%s289 + $0x28] sm:$0xff] %v300
                  %v302 = vld [vmem:[%s288 + $0x30] sm:$0xff]
                  %303 = vst [vmem:[%s289 + $0x30] sm:$0xff] %v302
                  %v304 = vld [vmem:[%s288 + $0x38] sm:$0xff]
                  %305 = vst [vmem:[%s289 + $0x38] sm:$0xff] %v304
                  %v306 = vld [vmem:[%s288 + $0x40] sm:$0xff]
                  %307 = vst [vmem:[%s289 + $0x40] sm:$0xff] %v306
                  %v308 = vld [vmem:[%s288 + $0x48] sm:$0xff]
                  %309 = vst [vmem:[%s289 + $0x48] sm:$0xff] %v308
                  %v310 = vld [vmem:[%s288 + $0x50] sm:$0xff]
                  %311 = vst [vmem:[%s289 + $0x50] sm:$0xff] %v310
                  %v312 = vld [vmem:[%s288 + $0x58] sm:$0xff]
                  %313 = vst [vmem:[%s289 + $0x58] sm:$0xff] %v312
                  %v314 = vld [vmem:[%s288 + $0x60] sm:$0xff]
                  %315 = vst [vmem:[%s289 + $0x60] sm:$0xff] %v314
                  %v316 = vld [vmem:[%s288 + $0x68] sm:$0xff]
                  %317 = vst [vmem:[%s289 + $0x68] sm:$0xff] %v316
                  %v318 = vld [vmem:[%s288 + $0x70] sm:$0xff]
                  %319 = vst [vmem:[%s289 + $0x70] sm:$0xff] %v318
                  %v320 = vld [vmem:[%s288 + $0x78] sm:$0xff]
                  %321 = vst [vmem:[%s289 + $0x78] sm:$0xff] %v320
                  %v322 = vld [vmem:[%s288 + $0x50] sm:$0xff]
                  %323 = vst [vmem:[%s289 + $0x20] sm:$0xff] %v322
                  %v324 = vld [vmem:[%s288 + $0x58] sm:$0xff]
                  %325 = vst [vmem:[%s289 + $0x28] sm:$0xff] %v324
                  %v326 = vld [vmem:[%s288 + $0x60] sm:$0xff]
                  %327 = vst [vmem:[%s289 + $0x30] sm:$0xff] %v326
                  %v328 = vld [vmem:[%s288 + $0x68] sm:$0xff]
                  %329 = vst [vmem:[%s289 + $0x38] sm:$0xff] %v328
                  %v330 = vld [vmem:[%s288 + $0x70] sm:$0xff]
                  %331 = vst [vmem:[%s289 + $0x40] sm:$0xff] %v330
                  %v332 = vld [vmem:[%s288 + $0x78] sm:$0xff]
                  %333 = vst [vmem:[%s289 + $0x48] sm:$0xff] %v332
                  %v334 = vld [vmem:[%s288 + $0x80] sm:$0xff]
                  %335 = vst [vmem:[%s289 + $0x50] sm:$0xff] %v334
                  %v336 = vld [vmem:[%s288 + $0x88] sm:$0xff]
                  %337 = vst [vmem:[%s289 + $0x58] sm:$0xff] %v336
                  %v338 = vld [vmem:[%s288 + $0x90] sm:$0xff]
                  %339 = vst [vmem:[%s289 + $0x60] sm:$0xff] %v338
                  %v340 = vld [vmem:[%s288 + $0x98] sm:$0xff]
                  %341 = vst [vmem:[%s289 + $0x68] sm:$0xff] %v340
                  %v342 = vld [vmem:[%s288 + $0xa0] sm:$0xff]
                  %343 = vst [vmem:[%s289 + $0x70] sm:$0xff] %v342
                  %v344 = vld [vmem:[%s288 + $0xa8] sm:$0xff]
                  %345 = vst [vmem:[%s289 + $0x78] sm:$0xff] %v344
                  %v346 = vld [vmem:[%s288 + $0xb0] sm:$0xff]
                  %347 = vst [vmem:[%s289 + $0x80] sm:$0xff] %v346
                  %v348 = vld [vmem:[%s288 + $0xb8] sm:$0xff]
                  %349 = vst [vmem:[%s289 + $0x88] sm:$0xff] %v348
                  %v350 = vld [vmem:[%s288 + $0xc0] sm:$0xff]
                  %351 = vst [vmem:[%s289 + $0x90] sm:$0xff] %v350
                  %v352 = vld [vmem:[%s288 + $0xc8] sm:$0xff]
                  %353 = vst [vmem:[%s289 + $0x98] sm:$0xff] %v352
                  %v354 = vld [vmem:[%s288 + $0xa0] sm:$0xff]
                  %355 = vst [vmem:[%s289 + $0x40] sm:$0xff] %v354
                  %v356 = vld [vmem:[%s288 + $0xa8] sm:$0xff]
                  %357 = vst [vmem:[%s289 + $0x48] sm:$0xff] %v356
                  %v358 = vld [vmem:[%s288 + $0xb0] sm:$0xff]
                  %359 = vst [vmem:[%s289 + $0x50] sm:$0xff] %v358
                  %v360 = vld [vmem:[%s288 + $0xb8] sm:$0xff]
                  %361 = vst [vmem:[%s289 + $0x58] sm:$0xff] %v360
                  %v362 = vld [vmem:[%s288 + $0xc0] sm:$0xff]
                  %363 = vst [vmem:[%s289 + $0x60] sm:$0xff] %v362
                  %v364 = vld [vmem:[%s288 + $0xc8] sm:$0xff]
                  %365 = vst [vmem:[%s289 + $0x68] sm:$0xff] %v364
                  %v366 = vld [vmem:[%s288 + $0xd0] sm:$0xff]
                  %367 = vst [vmem:[%s289 + $0x70] sm:$0xff] %v366
                  %v368 = vld [vmem:[%s288 + $0xd8] sm:$0xff]
                  %369 = vst [vmem:[%s289 + $0x78] sm:$0xff] %v368
                  %v370 = vld [vmem:[%s288 + $0xe0] sm:$0xff]
                  %371 = vst [vmem:[%s289 + $0x80] sm:$0xff] %v370
                  %v372 = vld [vmem:[%s288 + $0xe8] sm:$0xff]
                  %373 = vst [vmem:[%s289 + $0x88] sm:$0xff] %v372
                  %v374 = vld [vmem:[%s288 + $0xf0] sm:$0xff]
                  %375 = vst [vmem:[%s289 + $0x90] sm:$0xff] %v374
                  %v376 = vld [vmem:[%s288 + $0xf8] sm:$0xff]
                  %377 = vst [vmem:[%s289 + $0x98] sm:$0xff] %v376
                  %v378 = vld [vmem:[%s288 + $0x100] sm:$0xff]
                  %379 = vst [vmem:[%s289 + $0xa0] sm:$0xff] %v378
                  %v380 = vld [vmem:[%s288 + $0x108] sm:$0xff]
                  %381 = vst [vmem:[%s289 + $0xa8] sm:$0xff] %v380
                  %v382 = vld [vmem:[%s288 + $0x110] sm:$0xff]
                  %383 = vst [vmem:[%s289 + $0xb0] sm:$0xff] %v382
                  %v384 = vld [vmem:[%s288 + $0x118] sm:$0xff]
                  %385 = vst [vmem:[%s289 + $0xb8] sm:$0xff] %v384
                  %v386 = vld [vmem:[%s288 + $0xf0] sm:$0xff]
                  %387 = vst [vmem:[%s289 + $0x60] sm:$0xff] %v386
                  %v388 = vld [vmem:[%s288 + $0xf8] sm:$0xff]
                  %389 = vst [vmem:[%s289 + $0x68] sm:$0xff] %v388
                  %v390 = vld [vmem:[%s288 + $0x100] sm:$0xff]
                  %391 = vst [vmem:[%s289 + $0x70] sm:$0xff] %v390
                  %v392 = vld [vmem:[%s288 + $0x108] sm:$0xff]
                  %393 = vst [vmem:[%s289 + $0x78] sm:$0xff] %v392
                  %v394 = vld [vmem:[%s288 + $0x110] sm:$0xff]
                  %395 = vst [vmem:[%s289 + $0x80] sm:$0xff] %v394
                  %v396 = vld [vmem:[%s288 + $0x118] sm:$0xff]
                  %397 = vst [vmem:[%s289 + $0x88] sm:$0xff] %v396
                  %v398 = vld [vmem:[%s288 + $0x120] sm:$0xff]
                  %399 = vst [vmem:[%s289 + $0x90] sm:$0xff] %v398
                  %v400 = vld [vmem:[%s288 + $0x128] sm:$0xff]
                  %401 = vst [vmem:[%s289 + $0x98] sm:$0xff] %v400
                  %v402 = vld [vmem:[%s288 + $0x130] sm:$0xff]
                  %403 = vst [vmem:[%s289 + $0xa0] sm:$0xff] %v402
                  %v404 = vld [vmem:[%s288 + $0x138] sm:$0xff]
                  %405 = vst [vmem:[%s289 + $0xa8] sm:$0xff] %v404
                  %v406 = vld [vmem:[%s288 + $0x140] sm:$0xff]
                  %407 = vst [vmem:[%s289 + $0xb0] sm:$0xff] %v406
                  %v408 = vld [vmem:[%s288 + $0x148] sm:$0xff]
                  %409 = vst [vmem:[%s289 + $0xb8] sm:$0xff] %v408
                  %v410 = vld [vmem:[%s288 + $0x150] sm:$0xff]
                  %411 = vst [vmem:[%s289 + $0xc0] sm:$0xff] %v410
                  %v412 = vld [vmem:[%s288 + $0x158] sm:$0xff]
                  %413 = vst [vmem:[%s289 + $0xc8] sm:$0xff] %v412
                  %v414 = vld [vmem:[%s288 + $0x160] sm:$0xff]
                  %415 = vst [vmem:[%s289 + $0xd0] sm:$0xff] %v414
                  %v416 = vld [vmem:[%s288 + $0x168] sm:$0xff]
                  %417 = vst [vmem:[%s289 + $0xd8] sm:$0xff] %v416
                  %s418 = sadd.s32 1, %s287
                  %p419 = scmp.ge.s32.totalorder %s418, %s278
                  %s420 = scalar_select %p419, 0, %s418
                  %s421 = smul.u32 %s420, 128
                  %s422 = smul.u32 %s420, 128
                  %s423 = scalar_lea.vmem %s242, %s421
                  %s424 = scalar_lea.vmem %s234, %s422 [#allocation2]
                $region72: #{point_head_forward_single.3} parent=66 // loop_footer
                  %s284 = sadd.s32 %s282, 1
                $region73: #{point_head_forward_single.3} parent=66 // loop_footer_branch
                  %281 = sbr.rel target = $region69
                $region74: #{point_head_forward_single.3} parent=66 // loop_exit
                  _
                %s425 = sshrl.u32 %s277, 4
                %s426 = sand.u32 %s277, 15
                %s427 = smul.u32 %s425, 16
                %s428 = smul.u32 128, %s427
                %s429 = sshra.s32 %s428, 4
                %s430 = scalar_lea.vmem %s242, %s429
                %s431 = smul.u32 128, %s427
                %s432 = sshra.s32 %s431, 4
                %s433 = scalar_lea.vmem %s234, %s432 [#allocation2]
                // While loop
                $region75: #{point_head_forward_single.3} parent=66 // loop_pre_header
                  _
                $region76: #{point_head_forward_single.3} parent=66 // loop_header
                  %s437 = sphi 0, %s439
                  %p438 = scmp.ge.s32.totalorder %s437, %s426
                  %s442 = sphi 0, %s455
                  %s443 = sphi %s430, %s458
                  %s444 = sphi %s433, %s459
                $region77: #{point_head_forward_single.3} parent=66 // loop_header_branch
                  %441 = sbr.rel (%p438) target = $region81
                $region78: #{point_head_forward_single.3} parent=66 // loop_body
                  %v445 = vld [vmem:[%s443] sm:$0xff]
                  %446 = vst [vmem:[%s444] sm:$0xff] %v445
                  %v447 = vld [vmem:[%s443 + $0x50] sm:$0xff]
                  %448 = vst [vmem:[%s444 + $0x20] sm:$0xff] %v447
                  %v449 = vld [vmem:[%s443 + $0xa0] sm:$0xff]
                  %450 = vst [vmem:[%s444 + $0x40] sm:$0xff] %v449
                  %v451 = vld [vmem:[%s443 + $0xf0] sm:$0xff]
                  %452 = vst [vmem:[%s444 + $0x60] sm:$0xff] %v451
                  %s453 = sadd.s32 1, %s442
                  %p454 = scmp.ge.s32.totalorder %s453, %s426
                  %s455 = scalar_select %p454, 0, %s453
                  %s456 = smul.u32 %s455, 8
                  %s457 = smul.u32 %s455, 8
                  %s458 = scalar_lea.vmem %s430, %s456
                  %s459 = scalar_lea.vmem %s433, %s457 [#allocation2]
                $region79: #{point_head_forward_single.3} parent=66 // loop_footer
                  %s439 = sadd.s32 %s437, 1
                $region80: #{point_head_forward_single.3} parent=66 // loop_footer_branch
                  %436 = sbr.rel target = $region76
                $region81: #{point_head_forward_single.3} parent=66 // loop_exit
                  _
              $region67: #{point_head_forward_single.3} parent=51 // pred_fallthru
                _
              %p460 = pneg %p273
              // Predicated region
              $region82: #{point_head_forward_single.3} parent=51 // pred_check
                _
              $region83: #{point_head_forward_single.3} parent=51 // pred_check_branch
                %462 = sbr.rel (%p273) target = $region85
              $region84: #{point_head_forward_single.3} parent=51 // pred_region
                %s463 = sand.u32 %s243, 7
                %s464 = ssub.s32 %s243, %s463
                %s465 = scalar_lea.vmem %s242, %s464
                %s466 = ssub.s32 %s243, %s463
                %s467 = scalar_lea.vmem %s234, %s466 [#allocation2]
                %s468 = sshrl.u32 %s243, 3
                %s469 = sshrl.u32 %s468, 4
                // While loop
                $region86: #{point_head_forward_single.3} parent=84 // loop_pre_header
                  _
                $region87: #{point_head_forward_single.3} parent=84 // loop_header
                  %s473 = sphi 0, %s475
                  %p474 = scmp.ge.s32.totalorder %s473, %s469
                  %s478 = sphi 0, %s611
                  %s479 = sphi %s242, %s614
                  %s480 = sphi %s234, %s615
                $region88: #{point_head_forward_single.3} parent=84 // loop_header_branch
                  %477 = sbr.rel (%p474) target = $region92
                $region89: #{point_head_forward_single.3} parent=84 // loop_body
                  %v481 = vld [vmem:[%s479] sm:$0xff]
                  %482 = vst [vmem:[%s480] sm:$0xff] %v481
                  %v483 = vld [vmem:[%s479 + $0x8] sm:$0xff]
                  %484 = vst [vmem:[%s480 + $0x8] sm:$0xff] %v483
                  %v485 = vld [vmem:[%s479 + $0x10] sm:$0xff]
                  %486 = vst [vmem:[%s480 + $0x10] sm:$0xff] %v485
                  %v487 = vld [vmem:[%s479 + $0x18] sm:$0xff]
                  %488 = vst [vmem:[%s480 + $0x18] sm:$0xff] %v487
                  %v489 = vld [vmem:[%s479 + $0x20] sm:$0xff]
                  %490 = vst [vmem:[%s480 + $0x20] sm:$0xff] %v489
                  %v491 = vld [vmem:[%s479 + $0x28] sm:$0xff]
                  %492 = vst [vmem:[%s480 + $0x28] sm:$0xff] %v491
                  %v493 = vld [vmem:[%s479 + $0x30] sm:$0xff]
                  %494 = vst [vmem:[%s480 + $0x30] sm:$0xff] %v493
                  %v495 = vld [vmem:[%s479 + $0x38] sm:$0xff]
                  %496 = vst [vmem:[%s480 + $0x38] sm:$0xff] %v495
                  %v497 = vld [vmem:[%s479 + $0x40] sm:$0xff]
                  %498 = vst [vmem:[%s480 + $0x40] sm:$0xff] %v497
                  %v499 = vld [vmem:[%s479 + $0x48] sm:$0xff]
                  %500 = vst [vmem:[%s480 + $0x48] sm:$0xff] %v499
                  %v501 = vld [vmem:[%s479 + $0x50] sm:$0xff]
                  %502 = vst [vmem:[%s480 + $0x50] sm:$0xff] %v501
                  %v503 = vld [vmem:[%s479 + $0x58] sm:$0xff]
                  %504 = vst [vmem:[%s480 + $0x58] sm:$0xff] %v503
                  %v505 = vld [vmem:[%s479 + $0x60] sm:$0xff]
                  %506 = vst [vmem:[%s480 + $0x60] sm:$0xff] %v505
                  %v507 = vld [vmem:[%s479 + $0x68] sm:$0xff]
                  %508 = vst [vmem:[%s480 + $0x68] sm:$0xff] %v507
                  %v509 = vld [vmem:[%s479 + $0x70] sm:$0xff]
                  %510 = vst [vmem:[%s480 + $0x70] sm:$0xff] %v509
                  %v511 = vld [vmem:[%s479 + $0x78] sm:$0xff]
                  %512 = vst [vmem:[%s480 + $0x78] sm:$0xff] %v511
                  %v513 = vld [vmem:[%s479 + $0x50] sm:$0xff]
                  %514 = vst [vmem:[%s480 + $0x20] sm:$0xff] %v513
                  %v515 = vld [vmem:[%s479 + $0x58] sm:$0xff]
                  %516 = vst [vmem:[%s480 + $0x28] sm:$0xff] %v515
                  %v517 = vld [vmem:[%s479 + $0x60] sm:$0xff]
                  %518 = vst [vmem:[%s480 + $0x30] sm:$0xff] %v517
                  %v519 = vld [vmem:[%s479 + $0x68] sm:$0xff]
                  %520 = vst [vmem:[%s480 + $0x38] sm:$0xff] %v519
                  %v521 = vld [vmem:[%s479 + $0x70] sm:$0xff]
                  %522 = vst [vmem:[%s480 + $0x40] sm:$0xff] %v521
                  %v523 = vld [vmem:[%s479 + $0x78] sm:$0xff]
                  %524 = vst [vmem:[%s480 + $0x48] sm:$0xff] %v523
                  %v525 = vld [vmem:[%s479 + $0x80] sm:$0xff]
                  %526 = vst [vmem:[%s480 + $0x50] sm:$0xff] %v525
                  %v527 = vld [vmem:[%s479 + $0x88] sm:$0xff]
                  %528 = vst [vmem:[%s480 + $0x58] sm:$0xff] %v527
                  %v529 = vld [vmem:[%s479 + $0x90] sm:$0xff]
                  %530 = vst [vmem:[%s480 + $0x60] sm:$0xff] %v529
                  %v531 = vld [vmem:[%s479 + $0x98] sm:$0xff]
                  %532 = vst [vmem:[%s480 + $0x68] sm:$0xff] %v531
                  %v533 = vld [vmem:[%s479 + $0xa0] sm:$0xff]
                  %534 = vst [vmem:[%s480 + $0x70] sm:$0xff] %v533
                  %v535 = vld [vmem:[%s479 + $0xa8] sm:$0xff]
                  %536 = vst [vmem:[%s480 + $0x78] sm:$0xff] %v535
                  %v537 = vld [vmem:[%s479 + $0xb0] sm:$0xff]
                  %538 = vst [vmem:[%s480 + $0x80] sm:$0xff] %v537
                  %v539 = vld [vmem:[%s479 + $0xb8] sm:$0xff]
                  %540 = vst [vmem:[%s480 + $0x88] sm:$0xff] %v539
                  %v541 = vld [vmem:[%s479 + $0xc0] sm:$0xff]
                  %542 = vst [vmem:[%s480 + $0x90] sm:$0xff] %v541
                  %v543 = vld [vmem:[%s479 + $0xc8] sm:$0xff]
                  %544 = vst [vmem:[%s480 + $0x98] sm:$0xff] %v543
                  %v545 = vld [vmem:[%s479 + $0xa0] sm:$0xff]
                  %546 = vst [vmem:[%s480 + $0x40] sm:$0xff] %v545
                  %v547 = vld [vmem:[%s479 + $0xa8] sm:$0xff]
                  %548 = vst [vmem:[%s480 + $0x48] sm:$0xff] %v547
                  %v549 = vld [vmem:[%s479 + $0xb0] sm:$0xff]
                  %550 = vst [vmem:[%s480 + $0x50] sm:$0xff] %v549
                  %v551 = vld [vmem:[%s479 + $0xb8] sm:$0xff]
                  %552 = vst [vmem:[%s480 + $0x58] sm:$0xff] %v551
                  %v553 = vld [vmem:[%s479 + $0xc0] sm:$0xff]
                  %554 = vst [vmem:[%s480 + $0x60] sm:$0xff] %v553
                  %v555 = vld [vmem:[%s479 + $0xc8] sm:$0xff]
                  %556 = vst [vmem:[%s480 + $0x68] sm:$0xff] %v555
                  %v557 = vld [vmem:[%s479 + $0xd0] sm:$0xff]
                  %558 = vst [vmem:[%s480 + $0x70] sm:$0xff] %v557
                  %v559 = vld [vmem:[%s479 + $0xd8] sm:$0xff]
                  %560 = vst [vmem:[%s480 + $0x78] sm:$0xff] %v559
                  %v561 = vld [vmem:[%s479 + $0xe0] sm:$0xff]
                  %562 = vst [vmem:[%s480 + $0x80] sm:$0xff] %v561
                  %v563 = vld [vmem:[%s479 + $0xe8] sm:$0xff]
                  %564 = vst [vmem:[%s480 + $0x88] sm:$0xff] %v563
                  %v565 = vld [vmem:[%s479 + $0xf0] sm:$0xff]
                  %566 = vst [vmem:[%s480 + $0x90] sm:$0xff] %v565
                  %v567 = vld [vmem:[%s479 + $0xf8] sm:$0xff]
                  %568 = vst [vmem:[%s480 + $0x98] sm:$0xff] %v567
                  %v569 = vld [vmem:[%s479 + $0x100] sm:$0xff]
                  %570 = vst [vmem:[%s480 + $0xa0] sm:$0xff] %v569
                  %v571 = vld [vmem:[%s479 + $0x108] sm:$0xff]
                  %572 = vst [vmem:[%s480 + $0xa8] sm:$0xff] %v571
                  %v573 = vld [vmem:[%s479 + $0x110] sm:$0xff]
                  %574 = vst [vmem:[%s480 + $0xb0] sm:$0xff] %v573
                  %v575 = vld [vmem:[%s479 + $0x118] sm:$0xff]
                  %576 = vst [vmem:[%s480 + $0xb8] sm:$0xff] %v575
                  %v577 = vld [vmem:[%s479 + $0xf0] sm:$0xff]
                  %578 = vst [vmem:[%s480 + $0x60] sm:$0xff] %v577
                  %v579 = vld [vmem:[%s479 + $0xf8] sm:$0xff]
                  %580 = vst [vmem:[%s480 + $0x68] sm:$0xff] %v579
                  %v581 = vld [vmem:[%s479 + $0x100] sm:$0xff]
                  %582 = vst [vmem:[%s480 + $0x70] sm:$0xff] %v581
                  %v583 = vld [vmem:[%s479 + $0x108] sm:$0xff]
                  %584 = vst [vmem:[%s480 + $0x78] sm:$0xff] %v583
                  %v585 = vld [vmem:[%s479 + $0x110] sm:$0xff]
                  %586 = vst [vmem:[%s480 + $0x80] sm:$0xff] %v585
                  %v587 = vld [vmem:[%s479 + $0x118] sm:$0xff]
                  %588 = vst [vmem:[%s480 + $0x88] sm:$0xff] %v587
                  %v589 = vld [vmem:[%s479 + $0x120] sm:$0xff]
                  %590 = vst [vmem:[%s480 + $0x90] sm:$0xff] %v589
                  %v591 = vld [vmem:[%s479 + $0x128] sm:$0xff]
                  %592 = vst [vmem:[%s480 + $0x98] sm:$0xff] %v591
                  %v593 = vld [vmem:[%s479 + $0x130] sm:$0xff]
                  %594 = vst [vmem:[%s480 + $0xa0] sm:$0xff] %v593
                  %v595 = vld [vmem:[%s479 + $0x138] sm:$0xff]
                  %596 = vst [vmem:[%s480 + $0xa8] sm:$0xff] %v595
                  %v597 = vld [vmem:[%s479 + $0x140] sm:$0xff]
                  %598 = vst [vmem:[%s480 + $0xb0] sm:$0xff] %v597
                  %v599 = vld [vmem:[%s479 + $0x148] sm:$0xff]
                  %600 = vst [vmem:[%s480 + $0xb8] sm:$0xff] %v599
                  %v601 = vld [vmem:[%s479 + $0x150] sm:$0xff]
                  %602 = vst [vmem:[%s480 + $0xc0] sm:$0xff] %v601
                  %v603 = vld [vmem:[%s479 + $0x158] sm:$0xff]
                  %604 = vst [vmem:[%s480 + $0xc8] sm:$0xff] %v603
                  %v605 = vld [vmem:[%s479 + $0x160] sm:$0xff]
                  %606 = vst [vmem:[%s480 + $0xd0] sm:$0xff] %v605
                  %v607 = vld [vmem:[%s479 + $0x168] sm:$0xff]
                  %608 = vst [vmem:[%s480 + $0xd8] sm:$0xff] %v607
                  %s609 = sadd.s32 1, %s478
                  %p610 = scmp.ge.s32.totalorder %s609, %s469
                  %s611 = scalar_select %p610, 0, %s609
                  %s612 = smul.u32 %s611, 128
                  %s613 = smul.u32 %s611, 128
                  %s614 = scalar_lea.vmem %s242, %s612
                  %s615 = scalar_lea.vmem %s234, %s613 [#allocation2]
                $region90: #{point_head_forward_single.3} parent=84 // loop_footer
                  %s475 = sadd.s32 %s473, 1
                $region91: #{point_head_forward_single.3} parent=84 // loop_footer_branch
                  %472 = sbr.rel target = $region87
                $region92: #{point_head_forward_single.3} parent=84 // loop_exit
                  _
                %s616 = sshrl.u32 %s468, 4
                %s617 = sand.u32 %s468, 15
                %s618 = smul.u32 %s616, 16
                %s619 = smul.u32 128, %s618
                %s620 = sshra.s32 %s619, 4
                %s621 = scalar_lea.vmem %s242, %s620
                %s622 = smul.u32 128, %s618
                %s623 = sshra.s32 %s622, 4
                %s624 = scalar_lea.vmem %s234, %s623 [#allocation2]
                // While loop
                $region93: #{point_head_forward_single.3} parent=84 // loop_pre_header
                  _
                $region94: #{point_head_forward_single.3} parent=84 // loop_header
                  %s628 = sphi 0, %s630
                  %p629 = scmp.ge.s32.totalorder %s628, %s617
                  %s633 = sphi 0, %s646
                  %s634 = sphi %s621, %s649
                  %s635 = sphi %s624, %s650
                $region95: #{point_head_forward_single.3} parent=84 // loop_header_branch
                  %632 = sbr.rel (%p629) target = $region99
                $region96: #{point_head_forward_single.3} parent=84 // loop_body
                  %v636 = vld [vmem:[%s634] sm:$0xff]
                  %637 = vst [vmem:[%s635] sm:$0xff] %v636
                  %v638 = vld [vmem:[%s634 + $0x50] sm:$0xff]
                  %639 = vst [vmem:[%s635 + $0x20] sm:$0xff] %v638
                  %v640 = vld [vmem:[%s634 + $0xa0] sm:$0xff]
                  %641 = vst [vmem:[%s635 + $0x40] sm:$0xff] %v640
                  %v642 = vld [vmem:[%s634 + $0xf0] sm:$0xff]
                  %643 = vst [vmem:[%s635 + $0x60] sm:$0xff] %v642
                  %s644 = sadd.s32 1, %s633
                  %p645 = scmp.ge.s32.totalorder %s644, %s617
                  %s646 = scalar_select %p645, 0, %s644
                  %s647 = smul.u32 %s646, 8
                  %s648 = smul.u32 %s646, 8
                  %s649 = scalar_lea.vmem %s621, %s647
                  %s650 = scalar_lea.vmem %s624, %s648 [#allocation2]
                $region97: #{point_head_forward_single.3} parent=84 // loop_footer
                  %s630 = sadd.s32 %s628, 1
                $region98: #{point_head_forward_single.3} parent=84 // loop_footer_branch
                  %627 = sbr.rel target = $region94
                $region99: #{point_head_forward_single.3} parent=84 // loop_exit
                  _
                %s651 = sshll.u32 1, %s463
                %s652 = ssub.s32 %s651, 1
                loop: start=0, step=1, limit=1
                $region100: #{point_head_forward_single.3} parent=84 // loop_pre_header
                  _
                $region101: #{point_head_forward_single.3} parent=84 // loop_header
                  %s654 = sphi 0, %s658
                  %p655 = scmp.ge.s32.totalorder %s654, 1
                  %s659 = sphi %s465, %s465
                  %s660 = sphi %s467, %s467
                $region102: #{point_head_forward_single.3} parent=84 // loop_header_branch
                  %657 = sbr.rel (%p655) target = $region106
                $region103: #{point_head_forward_single.3} parent=84 // loop_body
                  %v661 = vld [vmem:[%s659] sm:%s652]
                  %662 = vst [vmem:[%s660] sm:%s652] %v661
                  %v663 = vld [vmem:[%s659 + $0x50] sm:%s652]
                  %664 = vst [vmem:[%s660 + $0x20] sm:%s652] %v663
                  %v665 = vld [vmem:[%s659 + $0xa0] sm:%s652]
                  %666 = vst [vmem:[%s660 + $0x40] sm:%s652] %v665
                  %v667 = vld [vmem:[%s659 + $0xf0] sm:%s652]
                  %668 = vst [vmem:[%s660 + $0x60] sm:%s652] %v667
                $region104: #{point_head_forward_single.3} parent=84 // loop_footer
                  %s658 = sadd.s32 1, %s654
                $region105: #{point_head_forward_single.3} parent=84 // loop_footer_branch
                  %653 = sbr.rel target = $region101
                $region106: #{point_head_forward_single.3} parent=84 // loop_exit
                  _
              $region85: #{point_head_forward_single.3} parent=51 // pred_fallthru
                _
            $region52: #{point_head_forward_single.3} parent=47 // pred_fallthru
              _
            // Predicated region
            $region53: #{point_head_forward_single.3} parent=47 // pred_check
              %p251 = pneg %p247
            $region54: #{point_head_forward_single.3} parent=47 // pred_check_branch
              %253 = sbr.rel (%p251) target = $region56
            $region55: #{point_head_forward_single.3} parent=47 // pred_region
              %s254 = sshll.u32 1, %s243
              %s255 = ssub.s32 %s254, 1
              loop: start=0, step=1, limit=1
              $region57: #{point_head_forward_single.3} parent=55 // loop_pre_header
                _
              $region58: #{point_head_forward_single.3} parent=55 // loop_header
                %s257 = sphi 0, %s261
                %p258 = scmp.ge.s32.totalorder %s257, 1
                %s262 = sphi %s242, %s242
                %s263 = sphi %s234, %s234
              $region59: #{point_head_forward_single.3} parent=55 // loop_header_branch
                %260 = sbr.rel (%p258) target = $region63
              $region60: #{point_head_forward_single.3} parent=55 // loop_body
                %v264 = vld [vmem:[%s262] sm:%s255]
                %265 = vst [vmem:[%s263] sm:%s255] %v264
                %v266 = vld [vmem:[%s262 + $0x50] sm:%s255]
                %267 = vst [vmem:[%s263 + $0x20] sm:%s255] %v266
                %v268 = vld [vmem:[%s262 + $0xa0] sm:%s255]
                %269 = vst [vmem:[%s263 + $0x40] sm:%s255] %v268
                %v270 = vld [vmem:[%s262 + $0xf0] sm:%s255]
                %271 = vst [vmem:[%s263 + $0x60] sm:%s255] %v270
              $region61: #{point_head_forward_single.3} parent=55 // loop_footer
                %s261 = sadd.s32 1, %s257
              $region62: #{point_head_forward_single.3} parent=55 // loop_footer_branch
                %256 = sbr.rel target = $region58
              $region63: #{point_head_forward_single.3} parent=55 // loop_exit
                _
            $region56: #{point_head_forward_single.3} parent=47 // pred_fallthru
              _
          $region48: #{point_head_forward_single.3} parent=43 // pred_fallthru
            _
          %669 = vnop
        $region44: #{point_head_forward_single.3} parent=39 // pred_fallthru
          _
      $region40: #{point_head_forward_single.3} parent=5 // pred_fallthru
        _
      %p670 = scmp.le.s32.totalorder 1, %s13
      %p671 = scmp.lt.s32.totalorder %s13, 4
      %p672 = pnand %p670, %p671
      %p673 = pneg %p672
      // Predicated region
      $region107: #{point_head_forward_single.3} parent=5 // pred_check
        _
      $region108: #{point_head_forward_single.3} parent=5 // pred_check_branch
        %675 = sbr.rel (%p672) target = $region110
      $region109: #{point_head_forward_single.3} parent=5 // pred_region
        %s676 = ssub.s32 %s13, 1
        %s677 = sand.u32 %s26, 1
        %s678 = sand.u32 %s26, 1
        %s679 = smul.addr %s678, 128
        %s680 = scalar_lea.vmem [#allocation2], %s679
        // Predicated region
        $region111: #{point_head_forward_single.3} parent=109 // pred_check
          %p681 = pneg %p39
        $region112: #{point_head_forward_single.3} parent=109 // pred_check_branch
          %683 = sbr.rel (%p681) target = $region114
        $region113: #{point_head_forward_single.3} parent=109 // pred_region
          _
        $region114: #{point_head_forward_single.3} parent=109 // pred_fallthru
          _
        %s684 = sand.u32 %s26, 1
        %s685 = sand.u32 %s26, 1
        %s686 = smul.addr %s685, 128
        %s687 = scalar_lea.vmem [#allocation2], %s686
        %p688 = pneg %p39
        %p689 = pneg %p36
        %p690 = pneg %p60
        %p691 = pneg %p57
        %p692 = pneg %p81
        %p693 = pneg %p78
        %p694 = pneg %p102
        %p695 = pneg %p99
        %p696 = pneg %p123
        %p697 = pneg %p120
        %p698 = pneg %p144
        %p699 = pneg %p141
        %p700 = pneg %p165
        %p701 = pneg %p162
        %p702 = pneg %p191
        %p703 = pneg %p188
        %s704 = sand.u32 %s178, 1
        %s705 = sand.u32 %s178, 1
        %s706 = smul.addr %s705, 32
        %s707 = scalar_lea.vmem [#allocation3], %s706
        %s708 = smul.u32 4, %s18
        %s709 = ssub.s32 10, %s708
        %p710 = scmp.lt.s32.totalorder %s709, 4
        %s711 = scalar_select %p710, %s709, 4
        %s712 = smul.u32 512, %s711
        %s713 = smul.u32 4, %s18
        %s714 = ssub.s32 10, %s713
        %p715 = scmp.lt.s32.totalorder %s714, 4
        %s716 = scalar_select %p715, %s714, 4
        %s717 = smul.u32 128, %s716
        %v718 = vld [vmem:[%s1] sm:$0xff]
        %v719 = vld [vmem:[%s1 + $0x8] sm:$0xff]
        %v720 = vld [vmem:[%s1 + $0x10] sm:$0xff]
        %v721 = vld [vmem:[%s1 + $0x18] sm:$0xff]
        %v722 = vmul.f32 %v718, 0.00083333335
        %v723 = vmul.f32 %v719, 0.00083333335
        %v724 = vmul.f32 %v720, 0.00083333335
        %v725 = vmul.f32 %v721, 0.00083333335
        %v726 = vld [vmem:[%s2] sm:$0xff]
        %v727 = vld [vmem:[%s2 + $0x8] sm:$0xff]
        %v728 = vld [vmem:[%s2 + $0x10] sm:$0xff]
        %v729 = vld [vmem:[%s2 + $0x18] sm:$0xff]
        %v730 = vmul.f32 %v726, 0.00083333335
        %v731 = vmul.f32 %v727, 0.00083333335
        %v732 = vmul.f32 %v728, 0.00083333335
        %v733 = vmul.f32 %v729, 0.00083333335
        %v734 = vmul.f32 %v722, %v722
        %v735 = vmul.f32 %v723, %v723
        %v736 = vmul.f32 %v724, %v724
        %v737 = vmul.f32 %v725, %v725
        %v738 = vsub.f32 %v730, %v734
        %v739 = vsub.f32 %v731, %v735
        %v740 = vsub.f32 %v732, %v736
        %v741 = vsub.f32 %v733, %v737
        %v742 = vmax.f32 %v738, 0.0
        %v743 = vmax.f32 %v739, 0.0
        %v744 = vmax.f32 %v740, 0.0
        %v745 = vmax.f32 %v741, 0.0
        %v746 = vld [vmem:[%s3] sm:$0xff]
        %v747 = vld [vmem:[%s3 + $0x8] sm:$0xff]
        %v748 = vld [vmem:[%s3 + $0x10] sm:$0xff]
        %v749 = vld [vmem:[%s3 + $0x18] sm:$0xff]
        %v750 = vadd.f32 %v742, 1e-05
        %v751 = vadd.f32 %v743, 1e-05
        %v752 = vadd.f32 %v744, 1e-05
        %v753 = vadd.f32 %v745, 1e-05
        %v754 = vrsqrt.pop %v750
        %v755 = vrsqrt.pop %v751
        %v756 = vrsqrt.pop %v752
        %v757 = vrsqrt.pop %v753
        %v758 = vmul.f32 %v746, %v754
        %v759 = vmul.f32 %v747, %v755
        %v760 = vmul.f32 %v748, %v756
        %v761 = vmul.f32 %v749, %v757
        %v762 = vld [vmem:[%s4] sm:$0xff]
        %v763 = vld [vmem:[%s4 + $0x8] sm:$0xff]
        %v764 = vld [vmem:[%s4 + $0x10] sm:$0xff]
        %v765 = vld [vmem:[%s4 + $0x18] sm:$0xff]
        %v766 = vmul.f32 %v722, %v758
        %v767 = vmul.f32 %v723, %v759
        %v768 = vmul.f32 %v724, %v760
        %v769 = vmul.f32 %v725, %v761
        %v770 = vsub.f32 %v762, %v766
        %v771 = vsub.f32 %v763, %v767
        %v772 = vsub.f32 %v764, %v768
        %v773 = vsub.f32 %v765, %v769
        %v774 = vld [vmem:[%s680] sm:$0xff]
        %v775 = vld [vmem:[%s680 + $0x8] sm:$0xff]
        %v776 = vld [vmem:[%s680 + $0x10] sm:$0xff]
        %v777 = vld [vmem:[%s680 + $0x18] sm:$0xff]
        %v778 = vld [vmem:[%s680 + $0x20] sm:$0xff]
        %v779 = vld [vmem:[%s680 + $0x28] sm:$0xff]
        %v780 = vld [vmem:[%s680 + $0x30] sm:$0xff]
        %v781 = vld [vmem:[%s680 + $0x38] sm:$0xff]
        %v782 = vld [vmem:[%s680 + $0x40] sm:$0xff]
        %v783 = vld [vmem:[%s680 + $0x48] sm:$0xff]
        %v784 = vld [vmem:[%s680 + $0x50] sm:$0xff]
        %v785 = vld [vmem:[%s680 + $0x58] sm:$0xff]
        %v786 = vld [vmem:[%s680 + $0x60] sm:$0xff]
        %v787 = vld [vmem:[%s680 + $0x68] sm:$0xff]
        %v788 = vld [vmem:[%s680 + $0x70] sm:$0xff]
        %v789 = vld [vmem:[%s680 + $0x78] sm:$0xff]
        %791 = vset.pattern.permute.xlu0 0
        %792 = vperm.xlu0 %791, %v758
        %v793 = vpop.permute.xlu0 %792
        %796 = vset.pattern.permute.xlu0 0
        %797 = vperm.xlu0 %796, %v759
        %v798 = vpop.permute.xlu0 %797
        %801 = vset.pattern.permute.xlu0 0
        %802 = vperm.xlu0 %801, %v760
        %v803 = vpop.permute.xlu0 %802
        %806 = vset.pattern.permute.xlu0 0
        %807 = vperm.xlu0 %806, %v761
        %v808 = vpop.permute.xlu0 %807
        %v810 = vmul.f32 %v774, %v793
        %v811 = vmul.f32 %v775, %v793
        %v812 = vmul.f32 %v776, %v793
        %v813 = vmul.f32 %v777, %v793
        %v814 = vmul.f32 %v778, %v798
        %v815 = vmul.f32 %v779, %v798
        %v816 = vmul.f32 %v780, %v798
        %v817 = vmul.f32 %v781, %v798
        %v818 = vmul.f32 %v782, %v803
        %v819 = vmul.f32 %v783, %v803
        %v820 = vmul.f32 %v784, %v803
        %v821 = vmul.f32 %v785, %v803
        %v822 = vmul.f32 %v786, %v808
        %v823 = vmul.f32 %v787, %v808
        %v824 = vmul.f32 %v788, %v808
        %v825 = vmul.f32 %v789, %v808
        %827 = vset.pattern.permute.xlu0 0
        %828 = vperm.xlu0 %827, %v770
        %v829 = vpop.permute.xlu0 %828
        %832 = vset.pattern.permute.xlu0 0
        %833 = vperm.xlu0 %832, %v771
        %v834 = vpop.permute.xlu0 %833
        %837 = vset.pattern.permute.xlu0 0
        %838 = vperm.xlu0 %837, %v772
        %v839 = vpop.permute.xlu0 %838
        %842 = vset.pattern.permute.xlu0 0
        %843 = vperm.xlu0 %842, %v773
        %v844 = vpop.permute.xlu0 %843
        %v846 = vadd.f32 %v810, %v829
        %v847 = vadd.f32 %v811, %v829
        %v848 = vadd.f32 %v812, %v829
        %v849 = vadd.f32 %v813, %v829
        %v850 = vadd.f32 %v814, %v834
        %v851 = vadd.f32 %v815, %v834
        %v852 = vadd.f32 %v816, %v834
        %v853 = vadd.f32 %v817, %v834
        %v854 = vadd.f32 %v818, %v839
        %v855 = vadd.f32 %v819, %v839
        %v856 = vadd.f32 %v820, %v839
        %v857 = vadd.f32 %v821, %v839
        %v858 = vadd.f32 %v822, %v844
        %v859 = vadd.f32 %v823, %v844
        %v860 = vadd.f32 %v824, %v844
        %v861 = vadd.f32 %v825, %v844
        %v862 = vmax.f32 %v846, 0.0
        %v863 = vmax.f32 %v847, 0.0
        %v864 = vmax.f32 %v848, 0.0
        %v865 = vmax.f32 %v849, 0.0
        %v866 = vmax.f32 %v850, 0.0
        %v867 = vmax.f32 %v851, 0.0
        %v868 = vmax.f32 %v852, 0.0
        %v869 = vmax.f32 %v853, 0.0
        %v870 = vmax.f32 %v854, 0.0
        %v871 = vmax.f32 %v855, 0.0
        %v872 = vmax.f32 %v856, 0.0
        %v873 = vmax.f32 %v857, 0.0
        %v874 = vmax.f32 %v858, 0.0
        %v875 = vmax.f32 %v859, 0.0
        %v876 = vmax.f32 %v860, 0.0
        %v877 = vmax.f32 %v861, 0.0
        %v878 = vld [vmem:[%s5] sm:$0xff]
        %v879 = vld [vmem:[%s6] sm:$0xff]
        %881 = vset.pattern.permute.xlu0 0
        %882 = vperm.xlu0 %881, %v879
        %v883 = vpop.permute.xlu0 %882
        %vm885 = vcmask 261120
        %v887 = vsel %vm885, %v878, 0
        %889 = vmatprep.subr.mxu0 0.0
        %890 = vmatpush1.msra.mxu0 0.0
        %891 = vmatprep.subr.mxu0 0.0
        %892 = vmatpush1.msra.mxu0 0.0
        %893 = vmatprep.subr.mxu0 0.0
        %894 = vmatpush1.msra.mxu0 0.0
        %895 = vmatprep.subr.mxu0 0.0
        %896 = vmatpush1.msra.mxu0 0.0
        %897 = vmatprep.subr.mxu0 0.0
        %898 = vmatpush1.msra.mxu0 0.0
        %899 = vmatprep.subr.mxu0 0.0
        %900 = vmatpush1.msra.mxu0 0.0
        %901 = vmatprep.subr.mxu0 0.0
        %902 = vmatpush1.msra.mxu0 0.0
        %903 = vmatprep.subr.mxu0 0.0
        %904 = vmatpush1.msra.mxu0 0.0
        %905 = vmatprep.subr.mxu0 0.0
        %906 = vmatpush1.msra.mxu0 0.0
        %907 = vmatprep.subr.mxu0 0.0
        %908 = vmatpush1.msra.mxu0 0.0
        %909 = vmatprep.subr.mxu0 0.0
        %910 = vmatpush1.msra.mxu0 0.0
        %911 = vmatprep.subr.mxu0 0.0
        %912 = vmatpush1.msra.mxu0 0.0
        %913 = vmatprep.subr.mxu0 %v875
        %914 = vmatpush1.msra.mxu0 %v874
        %915 = vmatprep.subr.mxu0 %v871
        %916 = vmatpush1.msra.mxu0 %v870
        %917 = vmatprep.subr.mxu0 %v867
        %918 = vmatpush1.msra.mxu0 %v866
        %919 = vmatprep.subr.mxu0 %v863
        %920 = vmatpush1.msra.mxu0 %v862
        %921 = vmatprep.subr.mxu0 0.0
        %922 = vmatpush2.msra.mxu0 0.0
        %923 = vmatprep.subr.mxu0 0.0
        %924 = vmatpush2.msra.mxu0 0.0
        %925 = vmatprep.subr.mxu0 0.0
        %926 = vmatpush2.msra.mxu0 0.0
        %927 = vmatprep.subr.mxu0 0.0
        %928 = vmatpush2.msra.mxu0 0.0
        %929 = vmatprep.subr.mxu0 0.0
        %930 = vmatpush2.msra.mxu0 0.0
        %931 = vmatprep.subr.mxu0 0.0
        %932 = vmatpush2.msra.mxu0 0.0
        %933 = vmatprep.subr.mxu0 0.0
        %934 = vmatpush2.msra.mxu0 0.0
        %935 = vmatprep.subr.mxu0 0.0
        %936 = vmatpush2.msra.mxu0 0.0
        %937 = vmatprep.subr.mxu0 0.0
        %938 = vmatpush2.msra.mxu0 0.0
        %939 = vmatprep.subr.mxu0 0.0
        %940 = vmatpush2.msra.mxu0 0.0
        %941 = vmatprep.subr.mxu0 0.0
        %942 = vmatpush2.msra.mxu0 0.0
        %943 = vmatprep.subr.mxu0 0.0
        %944 = vmatpush2.msra.mxu0 0.0
        %945 = vmatprep.subr.mxu0 0.0
        %946 = vmatpush2.msra.mxu0 0.0
        %947 = vmatprep.subr.mxu0 0.0
        %948 = vmatpush2.msra.mxu0 0.0
        %949 = vmatprep.subr.mxu0 0.0
        %950 = vmatpush2.msra.mxu0 0.0
        %951 = vmatprep.subr.mxu0 0.0
        %952 = vmatpush2.msra.mxu0 0.0
        %953 = vmatprep.mubr.f32.mxu0 0.0
        %954 = vmatmul.mubr.f32.gmra.mxu0 %v887
        %v955 = vpop.f32.mrf.mxu0
        %v956 = vadd.f32 %v883, %v955
        %v957 = vpop.f32.mrf.mxu0
        %v958 = vadd.f32 %v883, %v957
        %959 = vdwg.mxu0
        %960 = vmatprep.subr.mxu0 0.0
        %961 = vmatpush1.msra.mxu0 0.0
        %962 = vmatprep.subr.mxu0 0.0
        %963 = vmatpush1.msra.mxu0 0.0
        %964 = vmatprep.subr.mxu0 0.0
        %965 = vmatpush1.msra.mxu0 0.0
        %966 = vmatprep.subr.mxu0 0.0
        %967 = vmatpush1.msra.mxu0 0.0
        %968 = vmatprep.subr.mxu0 0.0
        %969 = vmatpush1.msra.mxu0 0.0
        %970 = vmatprep.subr.mxu0 0.0
        %971 = vmatpush1.msra.mxu0 0.0
        %972 = vmatprep.subr.mxu0 0.0
        %973 = vmatpush1.msra.mxu0 0.0
        %974 = vmatprep.subr.mxu0 0.0
        %975 = vmatpush1.msra.mxu0 0.0
        %976 = vmatprep.subr.mxu0 0.0
        %977 = vmatpush1.msra.mxu0 0.0
        %978 = vmatprep.subr.mxu0 0.0
        %979 = vmatpush1.msra.mxu0 0.0
        %980 = vmatprep.subr.mxu0 0.0
        %981 = vmatpush1.msra.mxu0 0.0
        %982 = vmatprep.subr.mxu0 0.0
        %983 = vmatpush1.msra.mxu0 0.0
        %984 = vmatprep.subr.mxu0 %v877
        %985 = vmatpush1.msra.mxu0 %v876
        %986 = vmatprep.subr.mxu0 %v873
        %987 = vmatpush1.msra.mxu0 %v872
        %988 = vmatprep.subr.mxu0 %v869
        %989 = vmatpush1.msra.mxu0 %v868
        %990 = vmatprep.subr.mxu0 %v865
        %991 = vmatpush1.msra.mxu0 %v864
        %992 = vmatprep.subr.mxu0 0.0
        %993 = vmatpush2.msra.mxu0 0.0
        %994 = vmatprep.subr.mxu0 0.0
        %995 = vmatpush2.msra.mxu0 0.0
        %996 = vmatprep.subr.mxu0 0.0
        %997 = vmatpush2.msra.mxu0 0.0
        %998 = vmatprep.subr.mxu0 0.0
        %999 = vmatpush2.msra.mxu0 0.0
        %1000 = vmatprep.subr.mxu0 0.0
        %1001 = vmatpush2.msra.mxu0 0.0
        %1002 = vmatprep.subr.mxu0 0.0
        %1003 = vmatpush2.msra.mxu0 0.0
        %1004 = vmatprep.subr.mxu0 0.0
        %1005 = vmatpush2.msra.mxu0 0.0
        %1006 = vmatprep.subr.mxu0 0.0
        %1007 = vmatpush2.msra.mxu0 0.0
        %1008 = vmatprep.subr.mxu0 0.0
        %1009 = vmatpush2.msra.mxu0 0.0
        %1010 = vmatprep.subr.mxu0 0.0
        %1011 = vmatpush2.msra.mxu0 0.0
        %1012 = vmatprep.subr.mxu0 0.0
        %1013 = vmatpush2.msra.mxu0 0.0
        %1014 = vmatprep.subr.mxu0 0.0
        %1015 = vmatpush2.msra.mxu0 0.0
        %1016 = vmatprep.subr.mxu0 0.0
        %1017 = vmatpush2.msra.mxu0 0.0
        %1018 = vmatprep.subr.mxu0 0.0
        %1019 = vmatpush2.msra.mxu0 0.0
        %1020 = vmatprep.subr.mxu0 0.0
        %1021 = vmatpush2.msra.mxu0 0.0
        %1022 = vmatprep.subr.mxu0 0.0
        %1023 = vmatpush2.msra.mxu0 0.0
        %1024 = vmatprep.mubr.f32.mxu0 0.0
        %1025 = vmatmul.mubr.f32.gmra.mxu0 %v887
        %v1026 = vpop.f32.mrf.mxu0
        %v1027 = vadd.f32 %v883, %v1026
        %v1028 = vpop.f32.mrf.mxu0
        %v1029 = vadd.f32 %v883, %v1028
        %1030 = vdwg.mxu0
        %1031 = vst [vmem:[%s707] sm:$0xff] %v956
        %1032 = vst [vmem:[%s707 + $0x8] sm:$0xff] %v958
        %1033 = vst [vmem:[%s707 + $0x10] sm:$0xff] %v1027
        %1034 = vst [vmem:[%s707 + $0x18] sm:$0xff] %v1029
        %s1035 = sand.u32 %s178, 1
        %s1036 = sand.u32 %s178, 1
        %s1037 = smul.addr %s1036, 32
        %s1038 = scalar_lea.vmem [#allocation3], %s1037
        // Predicated region
        $region115: #{point_head_forward_single.3} parent=109 // pred_check
          %p1039 = pneg %p188
        $region116: #{point_head_forward_single.3} parent=109 // pred_check_branch
          %1041 = sbr.rel (%p1039) target = $region118
        $region117: #{point_head_forward_single.3} parent=109 // pred_region
          %s1042 = smul.u32 4, %s18
          %s1043 = ssub.s32 10, %s1042
          %p1044 = scmp.lt.s32.totalorder %s1043, 4
          %s1045 = scalar_select %p1044, %s1043, 4
          %s1046 = smul.u32 128, %s1045
          %p1047 = scmp.ne.s32.totalorder 0, %s1046
          %s1048 = smul.addr %s1042, 8
          %s1049 = scalar_lea.vmem %s7, %s1048
          %s1050 = smul.u32 %s1045, 8
          // Predicated region
          $region119: #{point_head_forward_single.3} parent=117 // pred_check
            %p1051 = pneg %p1047
          $region120: #{point_head_forward_single.3} parent=117 // pred_check_branch
            %1053 = sbr.rel (%p1051) target = $region122
          $region121: #{point_head_forward_single.3} parent=117 // pred_region
            %p1054 = scmp.lt.u32.totalorder %s1050, 8
            %p1055 = pneg %p1054
            // Predicated region
            $region123: #{point_head_forward_single.3} parent=121 // pred_check
              _
            $region124: #{point_head_forward_single.3} parent=121 // pred_check_branch
              %1057 = sbr.rel (%p1054) target = $region126
            $region125: #{point_head_forward_single.3} parent=121 // pred_region
              %s1073 = sand.u32 %s1050, 7
              %p1074 = scmp.eq.s32.totalorder %s1073, 0
              // Predicated region
              $region138: #{point_head_forward_single.3} parent=125 // pred_check
                %p1075 = pneg %p1074
              $region139: #{point_head_forward_single.3} parent=125 // pred_check_branch
                %1077 = sbr.rel (%p1075) target = $region141
              $region140: #{point_head_forward_single.3} parent=125 // pred_region
                %s1078 = sshrl.u32 %s1050, 3
                %s1079 = sshrl.u32 %s1078, 6
                // While loop
                $region142: #{point_head_forward_single.3} parent=140 // loop_pre_header
                  _
                $region143: #{point_head_forward_single.3} parent=140 // loop_header
                  %s1083 = sphi 0, %s1085
                  %p1084 = scmp.ge.s32.totalorder %s1083, %s1079
                  %s1088 = sphi 0, %s1221
                  %s1089 = sphi %s1038, %s1224
                  %s1090 = sphi %s1049, %s1225
                $region144: #{point_head_forward_single.3} parent=140 // loop_header_branch
                  %1087 = sbr.rel (%p1084) target = $region148
                $region145: #{point_head_forward_single.3} parent=140 // loop_body
                  %v1091 = vld [vmem:[%s1089] sm:$0xff]
                  %1092 = vst [vmem:[%s1090] sm:$0xff] %v1091
                  %v1093 = vld [vmem:[%s1089 + $0x8] sm:$0xff]
                  %1094 = vst [vmem:[%s1090 + $0x8] sm:$0xff] %v1093
                  %v1095 = vld [vmem:[%s1089 + $0x10] sm:$0xff]
                  %1096 = vst [vmem:[%s1090 + $0x10] sm:$0xff] %v1095
                  %v1097 = vld [vmem:[%s1089 + $0x18] sm:$0xff]
                  %1098 = vst [vmem:[%s1090 + $0x18] sm:$0xff] %v1097
                  %v1099 = vld [vmem:[%s1089 + $0x20] sm:$0xff]
                  %1100 = vst [vmem:[%s1090 + $0x20] sm:$0xff] %v1099
                  %v1101 = vld [vmem:[%s1089 + $0x28] sm:$0xff]
                  %1102 = vst [vmem:[%s1090 + $0x28] sm:$0xff] %v1101
                  %v1103 = vld [vmem:[%s1089 + $0x30] sm:$0xff]
                  %1104 = vst [vmem:[%s1090 + $0x30] sm:$0xff] %v1103
                  %v1105 = vld [vmem:[%s1089 + $0x38] sm:$0xff]
                  %1106 = vst [vmem:[%s1090 + $0x38] sm:$0xff] %v1105
                  %v1107 = vld [vmem:[%s1089 + $0x40] sm:$0xff]
                  %1108 = vst [vmem:[%s1090 + $0x40] sm:$0xff] %v1107
                  %v1109 = vld [vmem:[%s1089 + $0x48] sm:$0xff]
                  %1110 = vst [vmem:[%s1090 + $0x48] sm:$0xff] %v1109
                  %v1111 = vld [vmem:[%s1089 + $0x50] sm:$0xff]
                  %1112 = vst [vmem:[%s1090 + $0x50] sm:$0xff] %v1111
                  %v1113 = vld [vmem:[%s1089 + $0x58] sm:$0xff]
                  %1114 = vst [vmem:[%s1090 + $0x58] sm:$0xff] %v1113
                  %v1115 = vld [vmem:[%s1089 + $0x60] sm:$0xff]
                  %1116 = vst [vmem:[%s1090 + $0x60] sm:$0xff] %v1115
                  %v1117 = vld [vmem:[%s1089 + $0x68] sm:$0xff]
                  %1118 = vst [vmem:[%s1090 + $0x68] sm:$0xff] %v1117
                  %v1119 = vld [vmem:[%s1089 + $0x70] sm:$0xff]
                  %1120 = vst [vmem:[%s1090 + $0x70] sm:$0xff] %v1119
                  %v1121 = vld [vmem:[%s1089 + $0x78] sm:$0xff]
                  %1122 = vst [vmem:[%s1090 + $0x78] sm:$0xff] %v1121
                  %v1123 = vld [vmem:[%s1089 + $0x80] sm:$0xff]
                  %1124 = vst [vmem:[%s1090 + $0x80] sm:$0xff] %v1123
                  %v1125 = vld [vmem:[%s1089 + $0x88] sm:$0xff]
                  %1126 = vst [vmem:[%s1090 + $0x88] sm:$0xff] %v1125
                  %v1127 = vld [vmem:[%s1089 + $0x90] sm:$0xff]
                  %1128 = vst [vmem:[%s1090 + $0x90] sm:$0xff] %v1127
                  %v1129 = vld [vmem:[%s1089 + $0x98] sm:$0xff]
                  %1130 = vst [vmem:[%s1090 + $0x98] sm:$0xff] %v1129
                  %v1131 = vld [vmem:[%s1089 + $0xa0] sm:$0xff]
                  %1132 = vst [vmem:[%s1090 + $0xa0] sm:$0xff] %v1131
                  %v1133 = vld [vmem:[%s1089 + $0xa8] sm:$0xff]
                  %1134 = vst [vmem:[%s1090 + $0xa8] sm:$0xff] %v1133
                  %v1135 = vld [vmem:[%s1089 + $0xb0] sm:$0xff]
                  %1136 = vst [vmem:[%s1090 + $0xb0] sm:$0xff] %v1135
                  %v1137 = vld [vmem:[%s1089 + $0xb8] sm:$0xff]
                  %1138 = vst [vmem:[%s1090 + $0xb8] sm:$0xff] %v1137
                  %v1139 = vld [vmem:[%s1089 + $0xc0] sm:$0xff]
                  %1140 = vst [vmem:[%s1090 + $0xc0] sm:$0xff] %v1139
                  %v1141 = vld [vmem:[%s1089 + $0xc8] sm:$0xff]
                  %1142 = vst [vmem:[%s1090 + $0xc8] sm:$0xff] %v1141
                  %v1143 = vld [vmem:[%s1089 + $0xd0] sm:$0xff]
                  %1144 = vst [vmem:[%s1090 + $0xd0] sm:$0xff] %v1143
                  %v1145 = vld [vmem:[%s1089 + $0xd8] sm:$0xff]
                  %1146 = vst [vmem:[%s1090 + $0xd8] sm:$0xff] %v1145
                  %v1147 = vld [vmem:[%s1089 + $0xe0] sm:$0xff]
                  %1148 = vst [vmem:[%s1090 + $0xe0] sm:$0xff] %v1147
                  %v1149 = vld [vmem:[%s1089 + $0xe8] sm:$0xff]
                  %1150 = vst [vmem:[%s1090 + $0xe8] sm:$0xff] %v1149
                  %v1151 = vld [vmem:[%s1089 + $0xf0] sm:$0xff]
                  %1152 = vst [vmem:[%s1090 + $0xf0] sm:$0xff] %v1151
                  %v1153 = vld [vmem:[%s1089 + $0xf8] sm:$0xff]
                  %1154 = vst [vmem:[%s1090 + $0xf8] sm:$0xff] %v1153
                  %v1155 = vld [vmem:[%s1089 + $0x100] sm:$0xff]
                  %1156 = vst [vmem:[%s1090 + $0x100] sm:$0xff] %v1155
                  %v1157 = vld [vmem:[%s1089 + $0x108] sm:$0xff]
                  %1158 = vst [vmem:[%s1090 + $0x108] sm:$0xff] %v1157
                  %v1159 = vld [vmem:[%s1089 + $0x110] sm:$0xff]
                  %1160 = vst [vmem:[%s1090 + $0x110] sm:$0xff] %v1159
                  %v1161 = vld [vmem:[%s1089 + $0x118] sm:$0xff]
                  %1162 = vst [vmem:[%s1090 + $0x118] sm:$0xff] %v1161
                  %v1163 = vld [vmem:[%s1089 + $0x120] sm:$0xff]
                  %1164 = vst [vmem:[%s1090 + $0x120] sm:$0xff] %v1163
                  %v1165 = vld [vmem:[%s1089 + $0x128] sm:$0xff]
                  %1166 = vst [vmem:[%s1090 + $0x128] sm:$0xff] %v1165
                  %v1167 = vld [vmem:[%s1089 + $0x130] sm:$0xff]
                  %1168 = vst [vmem:[%s1090 + $0x130] sm:$0xff] %v1167
                  %v1169 = vld [vmem:[%s1089 + $0x138] sm:$0xff]
                  %1170 = vst [vmem:[%s1090 + $0x138] sm:$0xff] %v1169
                  %v1171 = vld [vmem:[%s1089 + $0x140] sm:$0xff]
                  %1172 = vst [vmem:[%s1090 + $0x140] sm:$0xff] %v1171
                  %v1173 = vld [vmem:[%s1089 + $0x148] sm:$0xff]
                  %1174 = vst [vmem:[%s1090 + $0x148] sm:$0xff] %v1173
                  %v1175 = vld [vmem:[%s1089 + $0x150] sm:$0xff]
                  %1176 = vst [vmem:[%s1090 + $0x150] sm:$0xff] %v1175
                  %v1177 = vld [vmem:[%s1089 + $0x158] sm:$0xff]
                  %1178 = vst [vmem:[%s1090 + $0x158] sm:$0xff] %v1177
                  %v1179 = vld [vmem:[%s1089 + $0x160] sm:$0xff]
                  %1180 = vst [vmem:[%s1090 + $0x160] sm:$0xff] %v1179
                  %v1181 = vld [vmem:[%s1089 + $0x168] sm:$0xff]
                  %1182 = vst [vmem:[%s1090 + $0x168] sm:$0xff] %v1181
                  %v1183 = vld [vmem:[%s1089 + $0x170] sm:$0xff]
                  %1184 = vst [vmem:[%s1090 + $0x170] sm:$0xff] %v1183
                  %v1185 = vld [vmem:[%s1089 + $0x178] sm:$0xff]
                  %1186 = vst [vmem:[%s1090 + $0x178] sm:$0xff] %v1185
                  %v1187 = vld [vmem:[%s1089 + $0x180] sm:$0xff]
                  %1188 = vst [vmem:[%s1090 + $0x180] sm:$0xff] %v1187
                  %v1189 = vld [vmem:[%s1089 + $0x188] sm:$0xff]
                  %1190 = vst [vmem:[%s1090 + $0x188] sm:$0xff] %v1189
                  %v1191 = vld [vmem:[%s1089 + $0x190] sm:$0xff]
                  %1192 = vst [vmem:[%s1090 + $0x190] sm:$0xff] %v1191
                  %v1193 = vld [vmem:[%s1089 + $0x198] sm:$0xff]
                  %1194 = vst [vmem:[%s1090 + $0x198] sm:$0xff] %v1193
                  %v1195 = vld [vmem:[%s1089 + $0x1a0] sm:$0xff]
                  %1196 = vst [vmem:[%s1090 + $0x1a0] sm:$0xff] %v1195
                  %v1197 = vld [vmem:[%s1089 + $0x1a8] sm:$0xff]
                  %1198 = vst [vmem:[%s1090 + $0x1a8] sm:$0xff] %v1197
                  %v1199 = vld [vmem:[%s1089 + $0x1b0] sm:$0xff]
                  %1200 = vst [vmem:[%s1090 + $0x1b0] sm:$0xff] %v1199
                  %v1201 = vld [vmem:[%s1089 + $0x1b8] sm:$0xff]
                  %1202 = vst [vmem:[%s1090 + $0x1b8] sm:$0xff] %v1201
                  %v1203 = vld [vmem:[%s1089 + $0x1c0] sm:$0xff]
                  %1204 = vst [vmem:[%s1090 + $0x1c0] sm:$0xff] %v1203
                  %v1205 = vld [vmem:[%s1089 + $0x1c8] sm:$0xff]
                  %1206 = vst [vmem:[%s1090 + $0x1c8] sm:$0xff] %v1205
                  %v1207 = vld [vmem:[%s1089 + $0x1d0] sm:$0xff]
                  %1208 = vst [vmem:[%s1090 + $0x1d0] sm:$0xff] %v1207
                  %v1209 = vld [vmem:[%s1089 + $0x1d8] sm:$0xff]
                  %1210 = vst [vmem:[%s1090 + $0x1d8] sm:$0xff] %v1209
                  %v1211 = vld [vmem:[%s1089 + $0x1e0] sm:$0xff]
                  %1212 = vst [vmem:[%s1090 + $0x1e0] sm:$0xff] %v1211
                  %v1213 = vld [vmem:[%s1089 + $0x1e8] sm:$0xff]
                  %1214 = vst [vmem:[%s1090 + $0x1e8] sm:$0xff] %v1213
                  %v1215 = vld [vmem:[%s1089 + $0x1f0] sm:$0xff]
                  %1216 = vst [vmem:[%s1090 + $0x1f0] sm:$0xff] %v1215
                  %v1217 = vld [vmem:[%s1089 + $0x1f8] sm:$0xff]
                  %1218 = vst [vmem:[%s1090 + $0x1f8] sm:$0xff] %v1217
                  %s1219 = sadd.s32 1, %s1088
                  %p1220 = scmp.ge.s32.totalorder %s1219, %s1079
                  %s1221 = scalar_select %p1220, 0, %s1219
                  %s1222 = smul.u32 %s1221, 512
                  %s1223 = smul.u32 %s1221, 512
                  %s1224 = scalar_lea.vmem %s1038, %s1222 [#allocation3]
                  %s1225 = scalar_lea.vmem %s1049, %s1223
                $region146: #{point_head_forward_single.3} parent=140 // loop_footer
                  %s1085 = sadd.s32 %s1083, 1
                $region147: #{point_head_forward_single.3} parent=140 // loop_footer_branch
                  %1082 = sbr.rel target = $region143
                $region148: #{point_head_forward_single.3} parent=140 // loop_exit
                  _
                %s1226 = sshrl.u32 %s1078, 6
                %s1227 = sand.u32 %s1078, 63
                %s1228 = smul.u32 %s1226, 64
                %s1229 = smul.u32 128, %s1228
                %s1230 = sshra.s32 %s1229, 4
                %s1231 = scalar_lea.vmem %s1038, %s1230 [#allocation3]
                %s1232 = smul.u32 128, %s1228
                %s1233 = sshra.s32 %s1232, 4
                %s1234 = scalar_lea.vmem %s1049, %s1233
                // While loop
                $region149: #{point_head_forward_single.3} parent=140 // loop_pre_header
                  _
                $region150: #{point_head_forward_single.3} parent=140 // loop_header
                  %s1238 = sphi 0, %s1240
                  %p1239 = scmp.ge.s32.totalorder %s1238, %s1227
                  %s1243 = sphi 0, %s1250
                  %s1244 = sphi %s1231, %s1253
                  %s1245 = sphi %s1234, %s1254
                $region151: #{point_head_forward_single.3} parent=140 // loop_header_branch
                  %1242 = sbr.rel (%p1239) target = $region155
                $region152: #{point_head_forward_single.3} parent=140 // loop_body
                  %v1246 = vld [vmem:[%s1244] sm:$0xff]
                  %1247 = vst [vmem:[%s1245] sm:$0xff] %v1246
                  %s1248 = sadd.s32 1, %s1243
                  %p1249 = scmp.ge.s32.totalorder %s1248, %s1227
                  %s1250 = scalar_select %p1249, 0, %s1248
                  %s1251 = smul.u32 %s1250, 8
                  %s1252 = smul.u32 %s1250, 8
                  %s1253 = scalar_lea.vmem %s1231, %s1251 [#allocation3]
                  %s1254 = scalar_lea.vmem %s1234, %s1252
                $region153: #{point_head_forward_single.3} parent=140 // loop_footer
                  %s1240 = sadd.s32 %s1238, 1
                $region154: #{point_head_forward_single.3} parent=140 // loop_footer_branch
                  %1237 = sbr.rel target = $region150
                $region155: #{point_head_forward_single.3} parent=140 // loop_exit
                  _
              $region141: #{point_head_forward_single.3} parent=125 // pred_fallthru
                _
              %p1255 = pneg %p1074
              // Predicated region
              $region156: #{point_head_forward_single.3} parent=125 // pred_check
                _
              $region157: #{point_head_forward_single.3} parent=125 // pred_check_branch
                %1257 = sbr.rel (%p1074) target = $region159
              $region158: #{point_head_forward_single.3} parent=125 // pred_region
                %s1258 = sand.u32 %s1050, 7
                %s1259 = ssub.s32 %s1050, %s1258
                %s1260 = scalar_lea.vmem %s1038, %s1259 [#allocation3]
                %s1261 = ssub.s32 %s1050, %s1258
                %s1262 = scalar_lea.vmem %s1049, %s1261
                %s1263 = sshrl.u32 %s1050, 3
                %s1264 = sshrl.u32 %s1263, 6
                // While loop
                $region160: #{point_head_forward_single.3} parent=158 // loop_pre_header
                  _
                $region161: #{point_head_forward_single.3} parent=158 // loop_header
                  %s1268 = sphi 0, %s1270
                  %p1269 = scmp.ge.s32.totalorder %s1268, %s1264
                  %s1273 = sphi 0, %s1406
                  %s1274 = sphi %s1038, %s1409
                  %s1275 = sphi %s1049, %s1410
                $region162: #{point_head_forward_single.3} parent=158 // loop_header_branch
                  %1272 = sbr.rel (%p1269) target = $region166
                $region163: #{point_head_forward_single.3} parent=158 // loop_body
                  %v1276 = vld [vmem:[%s1274] sm:$0xff]
                  %1277 = vst [vmem:[%s1275] sm:$0xff] %v1276
                  %v1278 = vld [vmem:[%s1274 + $0x8] sm:$0xff]
                  %1279 = vst [vmem:[%s1275 + $0x8] sm:$0xff] %v1278
                  %v1280 = vld [vmem:[%s1274 + $0x10] sm:$0xff]
                  %1281 = vst [vmem:[%s1275 + $0x10] sm:$0xff] %v1280
                  %v1282 = vld [vmem:[%s1274 + $0x18] sm:$0xff]
                  %1283 = vst [vmem:[%s1275 + $0x18] sm:$0xff] %v1282
                  %v1284 = vld [vmem:[%s1274 + $0x20] sm:$0xff]
                  %1285 = vst [vmem:[%s1275 + $0x20] sm:$0xff] %v1284
                  %v1286 = vld [vmem:[%s1274 + $0x28] sm:$0xff]
                  %1287 = vst [vmem:[%s1275 + $0x28] sm:$0xff] %v1286
                  %v1288 = vld [vmem:[%s1274 + $0x30] sm:$0xff]
                  %1289 = vst [vmem:[%s1275 + $0x30] sm:$0xff] %v1288
                  %v1290 = vld [vmem:[%s1274 + $0x38] sm:$0xff]
                  %1291 = vst [vmem:[%s1275 + $0x38] sm:$0xff] %v1290
                  %v1292 = vld [vmem:[%s1274 + $0x40] sm:$0xff]
                  %1293 = vst [vmem:[%s1275 + $0x40] sm:$0xff] %v1292
                  %v1294 = vld [vmem:[%s1274 + $0x48] sm:$0xff]
                  %1295 = vst [vmem:[%s1275 + $0x48] sm:$0xff] %v1294
                  %v1296 = vld [vmem:[%s1274 + $0x50] sm:$0xff]
                  %1297 = vst [vmem:[%s1275 + $0x50] sm:$0xff] %v1296
                  %v1298 = vld [vmem:[%s1274 + $0x58] sm:$0xff]
                  %1299 = vst [vmem:[%s1275 + $0x58] sm:$0xff] %v1298
                  %v1300 = vld [vmem:[%s1274 + $0x60] sm:$0xff]
                  %1301 = vst [vmem:[%s1275 + $0x60] sm:$0xff] %v1300
                  %v1302 = vld [vmem:[%s1274 + $0x68] sm:$0xff]
                  %1303 = vst [vmem:[%s1275 + $0x68] sm:$0xff] %v1302
                  %v1304 = vld [vmem:[%s1274 + $0x70] sm:$0xff]
                  %1305 = vst [vmem:[%s1275 + $0x70] sm:$0xff] %v1304
                  %v1306 = vld [vmem:[%s1274 + $0x78] sm:$0xff]
                  %1307 = vst [vmem:[%s1275 + $0x78] sm:$0xff] %v1306
                  %v1308 = vld [vmem:[%s1274 + $0x80] sm:$0xff]
                  %1309 = vst [vmem:[%s1275 + $0x80] sm:$0xff] %v1308
                  %v1310 = vld [vmem:[%s1274 + $0x88] sm:$0xff]
                  %1311 = vst [vmem:[%s1275 + $0x88] sm:$0xff] %v1310
                  %v1312 = vld [vmem:[%s1274 + $0x90] sm:$0xff]
                  %1313 = vst [vmem:[%s1275 + $0x90] sm:$0xff] %v1312
                  %v1314 = vld [vmem:[%s1274 + $0x98] sm:$0xff]
                  %1315 = vst [vmem:[%s1275 + $0x98] sm:$0xff] %v1314
                  %v1316 = vld [vmem:[%s1274 + $0xa0] sm:$0xff]
                  %1317 = vst [vmem:[%s1275 + $0xa0] sm:$0xff] %v1316
                  %v1318 = vld [vmem:[%s1274 + $0xa8] sm:$0xff]
                  %1319 = vst [vmem:[%s1275 + $0xa8] sm:$0xff] %v1318
                  %v1320 = vld [vmem:[%s1274 + $0xb0] sm:$0xff]
                  %1321 = vst [vmem:[%s1275 + $0xb0] sm:$0xff] %v1320
                  %v1322 = vld [vmem:[%s1274 + $0xb8] sm:$0xff]
                  %1323 = vst [vmem:[%s1275 + $0xb8] sm:$0xff] %v1322
                  %v1324 = vld [vmem:[%s1274 + $0xc0] sm:$0xff]
                  %1325 = vst [vmem:[%s1275 + $0xc0] sm:$0xff] %v1324
                  %v1326 = vld [vmem:[%s1274 + $0xc8] sm:$0xff]
                  %1327 = vst [vmem:[%s1275 + $0xc8] sm:$0xff] %v1326
                  %v1328 = vld [vmem:[%s1274 + $0xd0] sm:$0xff]
                  %1329 = vst [vmem:[%s1275 + $0xd0] sm:$0xff] %v1328
                  %v1330 = vld [vmem:[%s1274 + $0xd8] sm:$0xff]
                  %1331 = vst [vmem:[%s1275 + $0xd8] sm:$0xff] %v1330
                  %v1332 = vld [vmem:[%s1274 + $0xe0] sm:$0xff]
                  %1333 = vst [vmem:[%s1275 + $0xe0] sm:$0xff] %v1332
                  %v1334 = vld [vmem:[%s1274 + $0xe8] sm:$0xff]
                  %1335 = vst [vmem:[%s1275 + $0xe8] sm:$0xff] %v1334
                  %v1336 = vld [vmem:[%s1274 + $0xf0] sm:$0xff]
                  %1337 = vst [vmem:[%s1275 + $0xf0] sm:$0xff] %v1336
                  %v1338 = vld [vmem:[%s1274 + $0xf8] sm:$0xff]
                  %1339 = vst [vmem:[%s1275 + $0xf8] sm:$0xff] %v1338
                  %v1340 = vld [vmem:[%s1274 + $0x100] sm:$0xff]
                  %1341 = vst [vmem:[%s1275 + $0x100] sm:$0xff] %v1340
                  %v1342 = vld [vmem:[%s1274 + $0x108] sm:$0xff]
                  %1343 = vst [vmem:[%s1275 + $0x108] sm:$0xff] %v1342
                  %v1344 = vld [vmem:[%s1274 + $0x110] sm:$0xff]
                  %1345 = vst [vmem:[%s1275 + $0x110] sm:$0xff] %v1344
                  %v1346 = vld [vmem:[%s1274 + $0x118] sm:$0xff]
                  %1347 = vst [vmem:[%s1275 + $0x118] sm:$0xff] %v1346
                  %v1348 = vld [vmem:[%s1274 + $0x120] sm:$0xff]
                  %1349 = vst [vmem:[%s1275 + $0x120] sm:$0xff] %v1348
                  %v1350 = vld [vmem:[%s1274 + $0x128] sm:$0xff]
                  %1351 = vst [vmem:[%s1275 + $0x128] sm:$0xff] %v1350
                  %v1352 = vld [vmem:[%s1274 + $0x130] sm:$0xff]
                  %1353 = vst [vmem:[%s1275 + $0x130] sm:$0xff] %v1352
                  %v1354 = vld [vmem:[%s1274 + $0x138] sm:$0xff]
                  %1355 = vst [vmem:[%s1275 + $0x138] sm:$0xff] %v1354
                  %v1356 = vld [vmem:[%s1274 + $0x140] sm:$0xff]
                  %1357 = vst [vmem:[%s1275 + $0x140] sm:$0xff] %v1356
                  %v1358 = vld [vmem:[%s1274 + $0x148] sm:$0xff]
                  %1359 = vst [vmem:[%s1275 + $0x148] sm:$0xff] %v1358
                  %v1360 = vld [vmem:[%s1274 + $0x150] sm:$0xff]
                  %1361 = vst [vmem:[%s1275 + $0x150] sm:$0xff] %v1360
                  %v1362 = vld [vmem:[%s1274 + $0x158] sm:$0xff]
                  %1363 = vst [vmem:[%s1275 + $0x158] sm:$0xff] %v1362
                  %v1364 = vld [vmem:[%s1274 + $0x160] sm:$0xff]
                  %1365 = vst [vmem:[%s1275 + $0x160] sm:$0xff] %v1364
                  %v1366 = vld [vmem:[%s1274 + $0x168] sm:$0xff]
                  %1367 = vst [vmem:[%s1275 + $0x168] sm:$0xff] %v1366
                  %v1368 = vld [vmem:[%s1274 + $0x170] sm:$0xff]
                  %1369 = vst [vmem:[%s1275 + $0x170] sm:$0xff] %v1368
                  %v1370 = vld [vmem:[%s1274 + $0x178] sm:$0xff]
                  %1371 = vst [vmem:[%s1275 + $0x178] sm:$0xff] %v1370
                  %v1372 = vld [vmem:[%s1274 + $0x180] sm:$0xff]
                  %1373 = vst [vmem:[%s1275 + $0x180] sm:$0xff] %v1372
                  %v1374 = vld [vmem:[%s1274 + $0x188] sm:$0xff]
                  %1375 = vst [vmem:[%s1275 + $0x188] sm:$0xff] %v1374
                  %v1376 = vld [vmem:[%s1274 + $0x190] sm:$0xff]
                  %1377 = vst [vmem:[%s1275 + $0x190] sm:$0xff] %v1376
                  %v1378 = vld [vmem:[%s1274 + $0x198] sm:$0xff]
                  %1379 = vst [vmem:[%s1275 + $0x198] sm:$0xff] %v1378
                  %v1380 = vld [vmem:[%s1274 + $0x1a0] sm:$0xff]
                  %1381 = vst [vmem:[%s1275 + $0x1a0] sm:$0xff] %v1380
                  %v1382 = vld [vmem:[%s1274 + $0x1a8] sm:$0xff]
                  %1383 = vst [vmem:[%s1275 + $0x1a8] sm:$0xff] %v1382
                  %v1384 = vld [vmem:[%s1274 + $0x1b0] sm:$0xff]
                  %1385 = vst [vmem:[%s1275 + $0x1b0] sm:$0xff] %v1384
                  %v1386 = vld [vmem:[%s1274 + $0x1b8] sm:$0xff]
                  %1387 = vst [vmem:[%s1275 + $0x1b8] sm:$0xff] %v1386
                  %v1388 = vld [vmem:[%s1274 + $0x1c0] sm:$0xff]
                  %1389 = vst [vmem:[%s1275 + $0x1c0] sm:$0xff] %v1388
                  %v1390 = vld [vmem:[%s1274 + $0x1c8] sm:$0xff]
                  %1391 = vst [vmem:[%s1275 + $0x1c8] sm:$0xff] %v1390
                  %v1392 = vld [vmem:[%s1274 + $0x1d0] sm:$0xff]
                  %1393 = vst [vmem:[%s1275 + $0x1d0] sm:$0xff] %v1392
                  %v1394 = vld [vmem:[%s1274 + $0x1d8] sm:$0xff]
                  %1395 = vst [vmem:[%s1275 + $0x1d8] sm:$0xff] %v1394
                  %v1396 = vld [vmem:[%s1274 + $0x1e0] sm:$0xff]
                  %1397 = vst [vmem:[%s1275 + $0x1e0] sm:$0xff] %v1396
                  %v1398 = vld [vmem:[%s1274 + $0x1e8] sm:$0xff]
                  %1399 = vst [vmem:[%s1275 + $0x1e8] sm:$0xff] %v1398
                  %v1400 = vld [vmem:[%s1274 + $0x1f0] sm:$0xff]
                  %1401 = vst [vmem:[%s1275 + $0x1f0] sm:$0xff] %v1400
                  %v1402 = vld [vmem:[%s1274 + $0x1f8] sm:$0xff]
                  %1403 = vst [vmem:[%s1275 + $0x1f8] sm:$0xff] %v1402
                  %s1404 = sadd.s32 1, %s1273
                  %p1405 = scmp.ge.s32.totalorder %s1404, %s1264
                  %s1406 = scalar_select %p1405, 0, %s1404
                  %s1407 = smul.u32 %s1406, 512
                  %s1408 = smul.u32 %s1406, 512
                  %s1409 = scalar_lea.vmem %s1038, %s1407 [#allocation3]
                  %s1410 = scalar_lea.vmem %s1049, %s1408
                $region164: #{point_head_forward_single.3} parent=158 // loop_footer
                  %s1270 = sadd.s32 %s1268, 1
                $region165: #{point_head_forward_single.3} parent=158 // loop_footer_branch
                  %1267 = sbr.rel target = $region161
                $region166: #{point_head_forward_single.3} parent=158 // loop_exit
                  _
                %s1411 = sshrl.u32 %s1263, 6
                %s1412 = sand.u32 %s1263, 63
                %s1413 = smul.u32 %s1411, 64
                %s1414 = smul.u32 128, %s1413
                %s1415 = sshra.s32 %s1414, 4
                %s1416 = scalar_lea.vmem %s1038, %s1415 [#allocation3]
                %s1417 = smul.u32 128, %s1413
                %s1418 = sshra.s32 %s1417, 4
                %s1419 = scalar_lea.vmem %s1049, %s1418
                // While loop
                $region167: #{point_head_forward_single.3} parent=158 // loop_pre_header
                  _
                $region168: #{point_head_forward_single.3} parent=158 // loop_header
                  %s1423 = sphi 0, %s1425
                  %p1424 = scmp.ge.s32.totalorder %s1423, %s1412
                  %s1428 = sphi 0, %s1435
                  %s1429 = sphi %s1416, %s1438
                  %s1430 = sphi %s1419, %s1439
                $region169: #{point_head_forward_single.3} parent=158 // loop_header_branch
                  %1427 = sbr.rel (%p1424) target = $region173
                $region170: #{point_head_forward_single.3} parent=158 // loop_body
                  %v1431 = vld [vmem:[%s1429] sm:$0xff]
                  %1432 = vst [vmem:[%s1430] sm:$0xff] %v1431
                  %s1433 = sadd.s32 1, %s1428
                  %p1434 = scmp.ge.s32.totalorder %s1433, %s1412
                  %s1435 = scalar_select %p1434, 0, %s1433
                  %s1436 = smul.u32 %s1435, 8
                  %s1437 = smul.u32 %s1435, 8
                  %s1438 = scalar_lea.vmem %s1416, %s1436 [#allocation3]
                  %s1439 = scalar_lea.vmem %s1419, %s1437
                $region171: #{point_head_forward_single.3} parent=158 // loop_footer
                  %s1425 = sadd.s32 %s1423, 1
                $region172: #{point_head_forward_single.3} parent=158 // loop_footer_branch
                  %1422 = sbr.rel target = $region168
                $region173: #{point_head_forward_single.3} parent=158 // loop_exit
                  _
                %s1440 = sshll.u32 1, %s1258
                %s1441 = ssub.s32 %s1440, 1
                loop: start=0, step=1, limit=1
                $region174: #{point_head_forward_single.3} parent=158 // loop_pre_header
                  _
                $region175: #{point_head_forward_single.3} parent=158 // loop_header
                  %s1443 = sphi 0, %s1447
                  %p1444 = scmp.ge.s32.totalorder %s1443, 1
                  %s1448 = sphi %s1260, %s1260
                  %s1449 = sphi %s1262, %s1262
                $region176: #{point_head_forward_single.3} parent=158 // loop_header_branch
                  %1446 = sbr.rel (%p1444) target = $region180
                $region177: #{point_head_forward_single.3} parent=158 // loop_body
                  %v1450 = vld [vmem:[%s1448] sm:%s1441]
                  %1451 = vst [vmem:[%s1449] sm:%s1441] %v1450
                $region178: #{point_head_forward_single.3} parent=158 // loop_footer
                  %s1447 = sadd.s32 1, %s1443
                $region179: #{point_head_forward_single.3} parent=158 // loop_footer_branch
                  %1442 = sbr.rel target = $region175
                $region180: #{point_head_forward_single.3} parent=158 // loop_exit
                  _
              $region159: #{point_head_forward_single.3} parent=125 // pred_fallthru
                _
            $region126: #{point_head_forward_single.3} parent=121 // pred_fallthru
              _
            // Predicated region
            $region127: #{point_head_forward_single.3} parent=121 // pred_check
              %p1058 = pneg %p1054
            $region128: #{point_head_forward_single.3} parent=121 // pred_check_branch
              %1060 = sbr.rel (%p1058) target = $region130
            $region129: #{point_head_forward_single.3} parent=121 // pred_region
              %s1061 = sshll.u32 1, %s1050
              %s1062 = ssub.s32 %s1061, 1
              loop: start=0, step=1, limit=1
              $region131: #{point_head_forward_single.3} parent=129 // loop_pre_header
                _
              $region132: #{point_head_forward_single.3} parent=129 // loop_header
                %s1064 = sphi 0, %s1068
                %p1065 = scmp.ge.s32.totalorder %s1064, 1
                %s1069 = sphi %s1038, %s1038
                %s1070 = sphi %s1049, %s1049
              $region133: #{point_head_forward_single.3} parent=129 // loop_header_branch
                %1067 = sbr.rel (%p1065) target = $region137
              $region134: #{point_head_forward_single.3} parent=129 // loop_body
                %v1071 = vld [vmem:[%s1069] sm:%s1062]
                %1072 = vst [vmem:[%s1070] sm:%s1062] %v1071
              $region135: #{point_head_forward_single.3} parent=129 // loop_footer
                %s1068 = sadd.s32 1, %s1064
              $region136: #{point_head_forward_single.3} parent=129 // loop_footer_branch
                %1063 = sbr.rel target = $region132
              $region137: #{point_head_forward_single.3} parent=129 // loop_exit
                _
            $region130: #{point_head_forward_single.3} parent=121 // pred_fallthru
              _
          $region122: #{point_head_forward_single.3} parent=117 // pred_fallthru
            _
          %1452 = vnop
        $region118: #{point_head_forward_single.3} parent=109 // pred_fallthru
          _
      $region110: #{point_head_forward_single.3} parent=5 // pred_fallthru
        _
      %p1453 = scmp.le.s32.totalorder 2, %s13
      // Predicated region
      $region181: #{point_head_forward_single.3} parent=5 // pred_check
        %p1454 = pneg %p1453
      $region182: #{point_head_forward_single.3} parent=5 // pred_check_branch
        %1456 = sbr.rel (%p1454) target = $region184
      $region183: #{point_head_forward_single.3} parent=5 // pred_region
        %s1457 = ssub.s32 %s13, 2
        // Predicated region
        $region185: #{point_head_forward_single.3} parent=183 // pred_check
          %p1458 = pneg %p194
        $region186: #{point_head_forward_single.3} parent=183 // pred_check_branch
          %1460 = sbr.rel (%p1458) target = $region188
        $region187: #{point_head_forward_single.3} parent=183 // pred_region
          %s1461 = sand.u32 %s179, 1
          %s1462 = sand.u32 %s179, 1
          %s1463 = smul.addr %s1462, 32
          %s1464 = scalar_lea.vmem [#allocation3], %s1463
        $region188: #{point_head_forward_single.3} parent=183 // pred_fallthru
          _
      $region184: #{point_head_forward_single.3} parent=5 // pred_fallthru
        _
    $region6: #{point_head_forward_single.3} parent=1 // loop_footer
      %s17 = sadd.s32 1, %s13
    $region7: #{point_head_forward_single.3} parent=1 // loop_footer_branch
      %12 = sbr.rel target = $region3
    $region8: #{point_head_forward_single.3} parent=1 // loop_exit
      _

// kernel: point_head_forward_single.2
$region0: #{point_head_forward_single.2}
  #allocation0 [shape = 'u32[]', space=smem, size = 0x4, offset = 0x4, fixed_abs, tag = 'smem constant byte address 0x4 - core index']
  #allocation1 [shape = 'u32[144,128]{1,0:T(1,128)}', space=vmem, size = 0x12000, scoped, tag = 'internal scratch']
  %s0 = inlined_call_operand.vmem [shape: f32[1200,96], index: 0, kind: input, shape index: {}]
  %s1 = inlined_call_operand.vmem [shape: f32[1200,32], index: 1, kind: input, shape index: {}]
  %s2 = inlined_call_operand.vmem [shape: f32[32,96], index: 2, kind: input, shape index: {}]
  %s3 = inlined_call_operand.vmem [shape: f32[32,32], index: 3, kind: input, shape index: {}]
  %s4 = inlined_call_operand.vmem [shape: f32[32,1200], index: 4, kind: output, shape index: {0}]
  %s5 = inlined_call_operand.vmem [shape: f32[32,1], index: 5, kind: output, shape index: {1}]
  %s6 = inlined_call_operand.vmem [shape: f32[32,1], index: 6, kind: output, shape index: {2}]
  %7 = xla_tuple %s4, %s5, %s6
  %s8 = sld [smem:[#allocation0]]
  $region88: #{point_head_forward_single.2} parent=0
    _
  %s10 = ssub.s32 1, %s8
  %s11 = scalar_select 0, %s10, %s8
  $region1: #{point_head_forward_single.2} parent=0
    #allocation2 [shape = 'u8[65536]{0}', space=vmem, size = 0x10000, scoped, tag = 'output window, operand 0']
    loop: start=0, step=1, limit=7
    $region2: #{point_head_forward_single.2} parent=1 // loop_pre_header
      _
    $region3: #{point_head_forward_single.2} parent=1 // loop_header
      %s13 = sphi 0, %s17
      %p14 = scmp.ge.s32.totalorder %s13, 7
      %s23 = sphi 0, %s25
      %s26 = sphi 0, %s23
      %s27 = sphi 0, %s26
      %s43 = sphi 0, %s27
      %s49 = sphi 0, %s51
      %s52 = sphi 0, %s49
      %s53 = sphi 0, %s52
      %s69 = sphi 0, %s53
      %s73 = sphi 0, %s73
      %s75 = sphi 0, %s73
      %s76 = sphi 0, %s75
      %s90 = sphi 0, %s76
      %s94 = sphi 0, %s94
      %s96 = sphi 0, %s94
      %s97 = sphi 0, %s96
      %s111 = sphi 0, %s97
      %s117 = sphi 0, %s119
      %s120 = sphi 0, %s117
      %s121 = sphi 0, %s120
      %s137 = sphi 0, %s121
      %s141 = sphi 0, %s141
      %s143 = sphi 0, %s141
      %s144 = sphi 0, %s143
      %s158 = sphi 0, %s144
      %s162 = sphi 0, %s162
      %s164 = sphi 0, %s162
      %s165 = sphi 0, %s164
      %s179 = sphi 0, %s165
    $region4: #{point_head_forward_single.2} parent=1 // loop_header_branch
      %16 = sbr.rel (%p14) target = $region8
    $region5: #{point_head_forward_single.2} parent=1 // loop_body
      %s18 = ssub.s32 %s13, 1
      %s19 = ssub.s32 %s13, 2
      %s20 = sadd.s32 %s13, 1
      %s21 = ssub.s32 %s13, %s20
      %p22 = scmp.eq.s32.totalorder %s21, 0
      %s24 = sadd.s32 %s23, 1
      %s25 = scalar_select %p22, %s23, %s24
      %p28 = pneg %p22
      %p29 = scmp.eq.s32.totalorder %s13, 4
      %p30 = por %p28, %p29
      %p31 = scmp.ne.s32.totalorder %s23, %s26
      %p32 = scmp.eq.s32.totalorder %s13, 0
      %p33 = por %p31, %p32
      %p34 = scmp.ne.s32.totalorder %s23, %s26
      %p35 = scmp.eq.s32.totalorder %s18, 4
      %p36 = por %p34, %p35
      %p37 = scmp.ne.s32.totalorder %s26, %s27
      %p38 = scmp.eq.s32.totalorder %s18, 0
      %p39 = por %p37, %p38
      %p40 = scmp.ne.s32.totalorder %s26, %s27
      %p41 = scmp.eq.s32.totalorder %s19, 4
      %p42 = por %p40, %p41
      %p44 = scmp.ne.s32.totalorder %s27, %s43
      %p45 = scmp.eq.s32.totalorder %s19, 0
      %p46 = por %p44, %p45
      %s47 = ssub.s32 %s13, %s20
      %p48 = scmp.eq.s32.totalorder %s47, 0
      %s50 = sadd.s32 %s49, 1
      %s51 = scalar_select %p48, %s49, %s50
      %p54 = pneg %p48
      %p55 = scmp.eq.s32.totalorder %s13, 4
      %p56 = por %p54, %p55
      %p57 = scmp.ne.s32.totalorder %s49, %s52
      %p58 = scmp.eq.s32.totalorder %s13, 0
      %p59 = por %p57, %p58
      %p60 = scmp.ne.s32.totalorder %s49, %s52
      %p61 = scmp.eq.s32.totalorder %s18, 4
      %p62 = por %p60, %p61
      %p63 = scmp.ne.s32.totalorder %s52, %s53
      %p64 = scmp.eq.s32.totalorder %s18, 0
      %p65 = por %p63, %p64
      %p66 = scmp.ne.s32.totalorder %s52, %s53
      %p67 = scmp.eq.s32.totalorder %s19, 4
      %p68 = por %p66, %p67
      %p70 = scmp.ne.s32.totalorder %s53, %s69
      %p71 = scmp.eq.s32.totalorder %s19, 0
      %p72 = por %p70, %p71
      %s74 = sadd.s32 %s73, 1
      %p77 = scmp.eq.s32.totalorder %s13, 4
      %p78 = scmp.ne.s32.totalorder %s73, %s75
      %p79 = scmp.eq.s32.totalorder %s13, 0
      %p80 = por %p78, %p79
      %p81 = scmp.ne.s32.totalorder %s73, %s75
      %p82 = scmp.eq.s32.totalorder %s18, 4
      %p83 = por %p81, %p82
      %p84 = scmp.ne.s32.totalorder %s75, %s76
      %p85 = scmp.eq.s32.totalorder %s18, 0
      %p86 = por %p84, %p85
      %p87 = scmp.ne.s32.totalorder %s75, %s76
      %p88 = scmp.eq.s32.totalorder %s19, 4
      %p89 = por %p87, %p88
      %p91 = scmp.ne.s32.totalorder %s76, %s90
      %p92 = scmp.eq.s32.totalorder %s19, 0
      %p93 = por %p91, %p92
      %s95 = sadd.s32 %s94, 1
      %p98 = scmp.eq.s32.totalorder %s13, 4
      %p99 = scmp.ne.s32.totalorder %s94, %s96
      %p100 = scmp.eq.s32.totalorder %s13, 0
      %p101 = por %p99, %p100
      %p102 = scmp.ne.s32.totalorder %s94, %s96
      %p103 = scmp.eq.s32.totalorder %s18, 4
      %p104 = por %p102, %p103
      %p105 = scmp.ne.s32.totalorder %s96, %s97
      %p106 = scmp.eq.s32.totalorder %s18, 0
      %p107 = por %p105, %p106
      %p108 = scmp.ne.s32.totalorder %s96, %s97
      %p109 = scmp.eq.s32.totalorder %s19, 4
      %p110 = por %p108, %p109
      %p112 = scmp.ne.s32.totalorder %s97, %s111
      %p113 = scmp.eq.s32.totalorder %s19, 0
      %p114 = por %p112, %p113
      %s115 = ssub.s32 %s13, %s20
      %p116 = scmp.eq.s32.totalorder %s115, 0
      %s118 = sadd.s32 %s117, 1
      %s119 = scalar_select %p116, %s117, %s118
      %p122 = pneg %p116
      %p123 = scmp.eq.s32.totalorder %s13, 4
      %p124 = por %p122, %p123
      %p125 = scmp.ne.s32.totalorder %s117, %s120
      %p126 = scmp.eq.s32.totalorder %s13, 0
      %p127 = por %p125, %p126
      %p128 = scmp.ne.s32.totalorder %s117, %s120
      %p129 = scmp.eq.s32.totalorder %s18, 4
      %p130 = por %p128, %p129
      %p131 = scmp.ne.s32.totalorder %s120, %s121
      %p132 = scmp.eq.s32.totalorder %s18, 0
      %p133 = por %p131, %p132
      %p134 = scmp.ne.s32.totalorder %s120, %s121
      %p135 = scmp.eq.s32.totalorder %s19, 4
      %p136 = por %p134, %p135
      %p138 = scmp.ne.s32.totalorder %s121, %s137
      %p139 = scmp.eq.s32.totalorder %s19, 0
      %p140 = por %p138, %p139
      %s142 = sadd.s32 %s141, 1
      %p145 = scmp.eq.s32.totalorder %s13, 4
      %p146 = scmp.ne.s32.totalorder %s141, %s143
      %p147 = scmp.eq.s32.totalorder %s13, 0
      %p148 = por %p146, %p147
      %p149 = scmp.ne.s32.totalorder %s141, %s143
      %p150 = scmp.eq.s32.totalorder %s18, 4
      %p151 = por %p149, %p150
      %p152 = scmp.ne.s32.totalorder %s143, %s144
      %p153 = scmp.eq.s32.totalorder %s18, 0
      %p154 = por %p152, %p153
      %p155 = scmp.ne.s32.totalorder %s143, %s144
      %p156 = scmp.eq.s32.totalorder %s19, 4
      %p157 = por %p155, %p156
      %p159 = scmp.ne.s32.totalorder %s144, %s158
      %p160 = scmp.eq.s32.totalorder %s19, 0
      %p161 = por %p159, %p160
      %s163 = sadd.s32 %s162, 1
      %p166 = scmp.eq.s32.totalorder %s13, 4
      %p167 = scmp.ne.s32.totalorder %s162, %s164
      %p168 = scmp.eq.s32.totalorder %s13, 0
      %p169 = por %p167, %p168
      %p170 = scmp.ne.s32.totalorder %s162, %s164
      %p171 = scmp.eq.s32.totalorder %s18, 4
      %p172 = por %p170, %p171
      %p173 = scmp.ne.s32.totalorder %s164, %s165
      %p174 = scmp.eq.s32.totalorder %s18, 0
      %p175 = por %p173, %p174
      %p176 = scmp.ne.s32.totalorder %s164, %s165
      %p177 = scmp.eq.s32.totalorder %s19, 4
      %p178 = por %p176, %p177
      %p180 = scmp.ne.s32.totalorder %s165, %s179
      %p181 = scmp.eq.s32.totalorder %s19, 0
      %p182 = por %p180, %p181
      %p183 = scmp.le.s32.totalorder 1, %s13
      %p184 = scmp.lt.s32.totalorder %s13, 6
      %p185 = pnand %p183, %p184
      %p186 = pneg %p185
      // Predicated region
      $region9: #{point_head_forward_single.2} parent=5 // pred_check
        _
      $region10: #{point_head_forward_single.2} parent=5 // pred_check_branch
        %188 = sbr.rel (%p185) target = $region12
      $region11: #{point_head_forward_single.2} parent=5 // pred_region
        %s189 = ssub.s32 %s13, 1
        // Predicated region
        $region13: #{point_head_forward_single.2} parent=11 // pred_check
          %p190 = pneg %p86
        $region14: #{point_head_forward_single.2} parent=11 // pred_check_branch
          %192 = sbr.rel (%p190) target = $region16
        $region15: #{point_head_forward_single.2} parent=11 // pred_region
          _
        $region16: #{point_head_forward_single.2} parent=11 // pred_fallthru
          _
        // Predicated region
        $region17: #{point_head_forward_single.2} parent=11 // pred_check
          %p193 = pneg %p107
        $region18: #{point_head_forward_single.2} parent=11 // pred_check_branch
          %195 = sbr.rel (%p193) target = $region20
        $region19: #{point_head_forward_single.2} parent=11 // pred_region
          _
        $region20: #{point_head_forward_single.2} parent=11 // pred_fallthru
          _
      $region12: #{point_head_forward_single.2} parent=5 // pred_fallthru
        _
      %p196 = scmp.lt.s32.totalorder %s13, 5
      // Predicated region
      $region21: #{point_head_forward_single.2} parent=5 // pred_check
        %p197 = pneg %p196
      $region22: #{point_head_forward_single.2} parent=5 // pred_check_branch
        %199 = sbr.rel (%p197) target = $region24
      $region23: #{point_head_forward_single.2} parent=5 // pred_region
        // Predicated region
        $region25: #{point_head_forward_single.2} parent=23 // pred_check
          %p200 = pneg %p33
        $region26: #{point_head_forward_single.2} parent=23 // pred_check_branch
          %202 = sbr.rel (%p200) target = $region28
        $region27: #{point_head_forward_single.2} parent=23 // pred_region
          %s203 = smul.u32 32, %s13
          %s204 = ssub.s32 150, %s203
          %p205 = scmp.lt.s32.totalorder %s204, 32
          %s206 = scalar_select %p205, %s204, 32
          %s207 = smul.u32 128, %s206
          %p208 = scmp.lt.s32.totalorder %s203, 149
          %s209 = scalar_select %p208, %s203, 149
          %s210 = smul.addr %s209, 8
          %s211 = scalar_lea.vmem %s0, %s210
          %s212 = smul.u32 32, %s13
          %s213 = ssub.s32 150, %s212
          %p214 = scmp.lt.s32.totalorder %s213, 32
          %s215 = scalar_select %p214, %s213, 32
          %s216 = smul.u32 128, %s215
        $region28: #{point_head_forward_single.2} parent=23 // pred_fallthru
          _
        // Predicated region
        $region29: #{point_head_forward_single.2} parent=23 // pred_check
          %p217 = pneg %p59
        $region30: #{point_head_forward_single.2} parent=23 // pred_check_branch
          %219 = sbr.rel (%p217) target = $region32
        $region31: #{point_head_forward_single.2} parent=23 // pred_region
          %s220 = smul.u32 32, %s13
          %s221 = ssub.s32 150, %s220
          %p222 = scmp.lt.s32.totalorder %s221, 32
          %s223 = scalar_select %p222, %s221, 32
          %s224 = smul.u32 128, %s223
          %p225 = scmp.lt.s32.totalorder %s220, 149
          %s226 = scalar_select %p225, %s220, 149
          %s227 = smul.addr %s226, 8
          %s228 = scalar_lea.vmem %s1, %s227
          %s229 = smul.u32 32, %s13
          %s230 = ssub.s32 150, %s229
          %p231 = scmp.lt.s32.totalorder %s230, 32
          %s232 = scalar_select %p231, %s230, 32
          %s233 = smul.u32 128, %s232
        $region32: #{point_head_forward_single.2} parent=23 // pred_fallthru
          _
      $region24: #{point_head_forward_single.2} parent=5 // pred_fallthru
        _
      %p234 = scmp.le.s32.totalorder 1, %s13
      %p235 = scmp.lt.s32.totalorder %s13, 6
      %p236 = pnand %p234, %p235
      %p237 = pneg %p236
      // Predicated region
      $region33: #{point_head_forward_single.2} parent=5 // pred_check
        _
      $region34: #{point_head_forward_single.2} parent=5 // pred_check_branch
        %239 = sbr.rel (%p236) target = $region36
      $region35: #{point_head_forward_single.2} parent=5 // pred_region
        %s240 = ssub.s32 %s13, 1
        %s241 = smul.u32 32, %s18
        %s242 = ssub.s32 150, %s241
        %p243 = scmp.lt.s32.totalorder %s242, 32
        %s244 = scalar_select %p243, %s242, 32
        %s245 = smul.u32 128, %s244
        %p246 = scmp.lt.s32.totalorder %s241, 149
        %s247 = scalar_select %p246, %s241, 149
        %s248 = smul.addr %s247, 8
        %s249 = scalar_lea.vmem %s0, %s248
        %p250 = pneg %p39
        %p251 = pneg %p36
        %s252 = smul.u32 32, %s18
        %s253 = ssub.s32 150, %s252
        %p254 = scmp.lt.s32.totalorder %s253, 32
        %s255 = scalar_select %p254, %s253, 32
        %s256 = smul.u32 128, %s255
        %p257 = scmp.lt.s32.totalorder %s252, 149
        %s258 = scalar_select %p257, %s252, 149
        %s259 = smul.addr %s258, 8
        %s260 = scalar_lea.vmem %s1, %s259
        %p261 = pneg %p65
        %p262 = pneg %p62
        %p263 = pneg %p86
        %p264 = pneg %p83
        %p265 = pneg %p107
        %p266 = pneg %p104
        %p267 = pneg %p133
        %p268 = pneg %p130
        %s269 = sand.u32 %s120, 1
        %s270 = sand.u32 %s120, 1
        %s271 = smul.addr %s270, 64
        %s272 = scalar_lea.vmem [#allocation2], %s271
        %p273 = pneg %p154
        %p274 = pneg %p151
        %p275 = pneg %p175
        %p276 = pneg %p172
        %s277 = smul.u32 32, %s18
        %s278 = ssub.s32 150, %s277
        %p279 = scmp.lt.s32.totalorder %s278, 32
        %s280 = scalar_select %p279, %s278, 32
        %s281 = smul.u32 128, %s280
        %p282 = scmp.lt.s32.totalorder %s277, 149
        %s283 = scalar_select %p282, %s277, 149
        %s284 = smul.addr %s283, 8
        %s285 = scalar_lea.vmem %s0, %s284
        %s286 = smul.u32 32, %s18
        %s287 = ssub.s32 150, %s286
        %p288 = scmp.lt.s32.totalorder %s287, 32
        %s289 = scalar_select %p288, %s287, 32
        %s290 = smul.u32 128, %s289
        %s291 = smul.u32 32, %s18
        %s292 = ssub.s32 150, %s291
        %p293 = scmp.lt.s32.totalorder %s292, 32
        %s294 = scalar_select %p293, %s292, 32
        %s295 = smul.u32 128, %s294
        %p296 = scmp.lt.s32.totalorder %s291, 149
        %s297 = scalar_select %p296, %s291, 149
        %s298 = smul.addr %s297, 8
        %s299 = scalar_lea.vmem %s1, %s298
        %s300 = smul.u32 32, %s18
        %s301 = ssub.s32 150, %s300
        %p302 = scmp.lt.s32.totalorder %s301, 32
        %s303 = scalar_select %p302, %s301, 32
        %s304 = smul.u32 128, %s303
        %s305 = smul.u32 2, %s18
        %p306 = scmp.eq.s32.totalorder %s18, 0
        // Predicated region
        $region37: #{point_head_forward_single.2} parent=35 // pred_check
          %p307 = pneg %p306
        $region38: #{point_head_forward_single.2} parent=35 // pred_check_branch
          %309 = sbr.rel (%p307) target = $region40
        $region39: #{point_head_forward_single.2} parent=35 // pred_region
          %vm310 = vcmask 7168
          %311 = vst.msk [vmem:[%s5] sm:$0xff] %vm310, 0.0
          %312 = vst.msk [vmem:[%s5 + $0x8] sm:$0xff] %vm310, 0.0
          %313 = vst.msk [vmem:[%s5 + $0x10] sm:$0xff] %vm310, 0.0
          %314 = vst.msk [vmem:[%s5 + $0x18] sm:$0xff] %vm310, 0.0
          %315 = vst.msk [vmem:[%s6] sm:$0xff] %vm310, 0.0
          %316 = vst.msk [vmem:[%s6 + $0x8] sm:$0xff] %vm310, 0.0
          %317 = vst.msk [vmem:[%s6 + $0x10] sm:$0xff] %vm310, 0.0
          %318 = vst.msk [vmem:[%s6 + $0x18] sm:$0xff] %vm310, 0.0
        $region40: #{point_head_forward_single.2} parent=35 // pred_fallthru
          _
        %v319 = vld [vmem:[%s2] sm:$0xff]
        %v320 = vld [vmem:[%s2 + $0x8] sm:$0xff]
        %v321 = vld [vmem:[%s2 + $0x10] sm:$0xff]
        %v322 = vld [vmem:[%s2 + $0x18] sm:$0xff]
        %v323 = vld [vmem:[%s285] sm:$0xff]
        %v324 = vld [vmem:[%s285 + $0x8] sm:$0xff]
        %v325 = vld [vmem:[%s285 + $0x10] sm:$0xff]
        %v326 = vld [vmem:[%s285 + $0x18] sm:$0xff]
        %v327 = vld [vmem:[%s285 + $0x20] sm:$0xff]
        %v328 = vld [vmem:[%s285 + $0x28] sm:$0xff]
        %v329 = vld [vmem:[%s285 + $0x30] sm:$0xff]
        %v330 = vld [vmem:[%s285 + $0x38] sm:$0xff]
        %v331 = vld [vmem:[%s285 + $0x40] sm:$0xff]
        %v332 = vld [vmem:[%s285 + $0x48] sm:$0xff]
        %v333 = vld [vmem:[%s285 + $0x50] sm:$0xff]
        %v334 = vld [vmem:[%s285 + $0x58] sm:$0xff]
        %v335 = vld [vmem:[%s285 + $0x60] sm:$0xff]
        %v336 = vld [vmem:[%s285 + $0x68] sm:$0xff]
        %v337 = vld [vmem:[%s285 + $0x70] sm:$0xff]
        %v338 = vld [vmem:[%s285 + $0x78] sm:$0xff]
        %v339 = vld [vmem:[%s285 + $0x80] sm:$0xff]
        %v340 = vld [vmem:[%s285 + $0x88] sm:$0xff]
        %v341 = vld [vmem:[%s285 + $0x90] sm:$0xff]
        %v342 = vld [vmem:[%s285 + $0x98] sm:$0xff]
        %v343 = vld [vmem:[%s285 + $0xa0] sm:$0xff]
        %v344 = vld [vmem:[%s285 + $0xa8] sm:$0xff]
        %v345 = vld [vmem:[%s285 + $0xb0] sm:$0xff]
        %v346 = vld [vmem:[%s285 + $0xb8] sm:$0xff]
        %v347 = vld [vmem:[%s285 + $0xc0] sm:$0xff]
        %v348 = vld [vmem:[%s285 + $0xc8] sm:$0xff]
        %v349 = vld [vmem:[%s285 + $0xd0] sm:$0xff]
        %v350 = vld [vmem:[%s285 + $0xd8] sm:$0xff]
        %v351 = vld [vmem:[%s285 + $0xe0] sm:$0xff]
        %v352 = vld [vmem:[%s285 + $0xe8] sm:$0xff]
        %v353 = vld [vmem:[%s285 + $0xf0] sm:$0xff]
        %v354 = vld [vmem:[%s285 + $0xf8] sm:$0xff]
        %v355 = vld [vmem:[%s3] sm:$0xff]
        %v356 = vld [vmem:[%s3 + $0x8] sm:$0xff]
        %v357 = vld [vmem:[%s3 + $0x10] sm:$0xff]
        %v358 = vld [vmem:[%s3 + $0x18] sm:$0xff]
        %v359 = vld [vmem:[%s299] sm:$0xff]
        %v360 = vld [vmem:[%s299 + $0x8] sm:$0xff]
        %v361 = vld [vmem:[%s299 + $0x10] sm:$0xff]
        %v362 = vld [vmem:[%s299 + $0x18] sm:$0xff]
        %v363 = vld [vmem:[%s299 + $0x20] sm:$0xff]
        %v364 = vld [vmem:[%s299 + $0x28] sm:$0xff]
        %v365 = vld [vmem:[%s299 + $0x30] sm:$0xff]
        %v366 = vld [vmem:[%s299 + $0x38] sm:$0xff]
        %v367 = vld [vmem:[%s299 + $0x40] sm:$0xff]
        %v368 = vld [vmem:[%s299 + $0x48] sm:$0xff]
        %v369 = vld [vmem:[%s299 + $0x50] sm:$0xff]
        %v370 = vld [vmem:[%s299 + $0x58] sm:$0xff]
        %v371 = vld [vmem:[%s299 + $0x60] sm:$0xff]
        %v372 = vld [vmem:[%s299 + $0x68] sm:$0xff]
        %v373 = vld [vmem:[%s299 + $0x70] sm:$0xff]
        %v374 = vld [vmem:[%s299 + $0x78] sm:$0xff]
        %v375 = vld [vmem:[%s299 + $0x80] sm:$0xff]
        %v376 = vld [vmem:[%s299 + $0x88] sm:$0xff]
        %v377 = vld [vmem:[%s299 + $0x90] sm:$0xff]
        %v378 = vld [vmem:[%s299 + $0x98] sm:$0xff]
        %v379 = vld [vmem:[%s299 + $0xa0] sm:$0xff]
        %v380 = vld [vmem:[%s299 + $0xa8] sm:$0xff]
        %v381 = vld [vmem:[%s299 + $0xb0] sm:$0xff]
        %v382 = vld [vmem:[%s299 + $0xb8] sm:$0xff]
        %v383 = vld [vmem:[%s299 + $0xc0] sm:$0xff]
        %v384 = vld [vmem:[%s299 + $0xc8] sm:$0xff]
        %v385 = vld [vmem:[%s299 + $0xd0] sm:$0xff]
        %v386 = vld [vmem:[%s299 + $0xd8] sm:$0xff]
        %v387 = vld [vmem:[%s299 + $0xe0] sm:$0xff]
        %v388 = vld [vmem:[%s299 + $0xe8] sm:$0xff]
        %v389 = vld [vmem:[%s299 + $0xf0] sm:$0xff]
        %v390 = vld [vmem:[%s299 + $0xf8] sm:$0xff]
        %vm391 = vcmask 261120
        %v393 = vsel %vm391, %v355, 0
        %v396 = vsel %vm391, %v356, 0
        %v399 = vsel %vm391, %v357, 0
        %v402 = vsel %vm391, %v358, 0
        %v405 = vsel %vm391, %v359, 0
        %v408 = vsel %vm391, %v360, 0
        %v411 = vsel %vm391, %v361, 0
        %v414 = vsel %vm391, %v362, 0
        %v417 = vsel %vm391, %v363, 0
        %v420 = vsel %vm391, %v364, 0
        %v423 = vsel %vm391, %v365, 0
        %v426 = vsel %vm391, %v366, 0
        %v429 = vsel %vm391, %v367, 0
        %v432 = vsel %vm391, %v368, 0
        %v435 = vsel %vm391, %v369, 0
        %v438 = vsel %vm391, %v370, 0
        %v441 = vsel %vm391, %v371, 0
        %v444 = vsel %vm391, %v372, 0
        %v447 = vsel %vm391, %v373, 0
        %v450 = vsel %vm391, %v374, 0
        %v453 = vsel %vm391, %v375, 0
        %v456 = vsel %vm391, %v376, 0
        %v459 = vsel %vm391, %v377, 0
        %v462 = vsel %vm391, %v378, 0
        %v465 = vsel %vm391, %v379, 0
        %v468 = vsel %vm391, %v380, 0
        %v471 = vsel %vm391, %v381, 0
        %v474 = vsel %vm391, %v382, 0
        %v477 = vsel %vm391, %v383, 0
        %v480 = vsel %vm391, %v384, 0
        %v483 = vsel %vm391, %v385, 0
        %v486 = vsel %vm391, %v386, 0
        %v489 = vsel %vm391, %v387, 0
        %v492 = vsel %vm391, %v388, 0
        %v495 = vsel %vm391, %v389, 0
        %v498 = vsel %vm391, %v390, 0
        %500 = vmatprep.subr.mxu0 0.0
        %501 = vmatpush1.xpose.msra.mxu0 %v450
        %502 = vmatprep.subr.mxu0 0.0
        %503 = vmatpush1.xpose.msra.mxu0 %v447
        %504 = vmatprep.subr.mxu0 0.0
        %505 = vmatpush1.xpose.msra.mxu0 %v444
        %506 = vmatprep.subr.mxu0 0.0
        %507 = vmatpush1.xpose.msra.mxu0 %v441
        %508 = vmatprep.subr.mxu0 0.0
        %509 = vmatpush1.xpose.msra.mxu0 %v438
        %510 = vmatprep.subr.mxu0 0.0
        %511 = vmatpush1.xpose.msra.mxu0 %v435
        %512 = vmatprep.subr.mxu0 0.0
        %513 = vmatpush1.xpose.msra.mxu0 %v432
        %514 = vmatprep.subr.mxu0 0.0
        %515 = vmatpush1.xpose.msra.mxu0 %v429
        %516 = vmatprep.subr.mxu0 0.0
        %517 = vmatpush1.xpose.msra.mxu0 %v426
        %518 = vmatprep.subr.mxu0 0.0
        %519 = vmatpush1.xpose.msra.mxu0 %v423
        %520 = vmatprep.subr.mxu0 0.0
        %521 = vmatpush1.xpose.msra.mxu0 %v420
        %522 = vmatprep.subr.mxu0 0.0
        %523 = vmatpush1.xpose.msra.mxu0 %v417
        %524 = vmatprep.subr.mxu0 0.0
        %525 = vmatpush1.xpose.msra.mxu0 %v414
        %526 = vmatprep.subr.mxu0 0.0
        %527 = vmatpush1.xpose.msra.mxu0 %v411
        %528 = vmatprep.subr.mxu0 0.0
        %529 = vmatpush1.xpose.msra.mxu0 %v408
        %530 = vmatprep.subr.mxu0 0.0
        %531 = vmatpush1.xpose.msra.mxu0 %v405
        %532 = vmatprep.subr.mxu0 0.0
        %533 = vmatpush2.xpose.msra.mxu0 %v498
        %534 = vmatprep.subr.mxu0 0.0
        %535 = vmatpush2.xpose.msra.mxu0 %v495
        %536 = vmatprep.subr.mxu0 0.0
        %537 = vmatpush2.xpose.msra.mxu0 %v492
        %538 = vmatprep.subr.mxu0 0.0
        %539 = vmatpush2.xpose.msra.mxu0 %v489
        %540 = vmatprep.subr.mxu0 0.0
        %541 = vmatpush2.xpose.msra.mxu0 %v486
        %542 = vmatprep.subr.mxu0 0.0
        %543 = vmatpush2.xpose.msra.mxu0 %v483
        %544 = vmatprep.subr.mxu0 0.0
        %545 = vmatpush2.xpose.msra.mxu0 %v480
        %546 = vmatprep.subr.mxu0 0.0
        %547 = vmatpush2.xpose.msra.mxu0 %v477
        %548 = vmatprep.subr.mxu0 0.0
        %549 = vmatpush2.xpose.msra.mxu0 %v474
        %550 = vmatprep.subr.mxu0 0.0
        %551 = vmatpush2.xpose.msra.mxu0 %v471
        %552 = vmatprep.subr.mxu0 0.0
        %553 = vmatpush2.xpose.msra.mxu0 %v468
        %554 = vmatprep.subr.mxu0 0.0
        %555 = vmatpush2.xpose.msra.mxu0 %v465
        %556 = vmatprep.subr.mxu0 0.0
        %557 = vmatpush2.xpose.msra.mxu0 %v462
        %558 = vmatprep.subr.mxu0 0.0
        %559 = vmatpush2.xpose.msra.mxu0 %v459
        %560 = vmatprep.subr.mxu0 0.0
        %561 = vmatpush2.xpose.msra.mxu0 %v456
        %562 = vmatprep.subr.mxu0 0.0
        %563 = vmatpush2.xpose.msra.mxu0 %v453
        %564 = vmatprep.mubr.f32.mxu0 0.0
        %565 = vmatmul.mubr.f32.gmra.mxu0 %v393
        %v566 = vpop.f32.mrf.mxu0
        %v567 = vadd.f32 0.0, %v566
        %v568 = vpop.f32.mrf.mxu0
        %v569 = vadd.f32 0.0, %v568
        %570 = vmatprep.mubr.f32.mxu0 0.0
        %571 = vmatmul.mubr.f32.gmra.mxu0 %v396
        %v572 = vpop.f32.mrf.mxu0
        %v573 = vadd.f32 0.0, %v572
        %v574 = vpop.f32.mrf.mxu0
        %v575 = vadd.f32 0.0, %v574
        %576 = vmatprep.mubr.f32.mxu0 0.0
        %577 = vmatmul.mubr.f32.gmra.mxu0 %v399
        %v578 = vpop.f32.mrf.mxu0
        %v579 = vadd.f32 0.0, %v578
        %v580 = vpop.f32.mrf.mxu0
        %v581 = vadd.f32 0.0, %v580
        %582 = vmatprep.mubr.f32.mxu0 0.0
        %583 = vmatmul.mubr.f32.gmra.mxu0 %v402
        %v584 = vpop.f32.mrf.mxu0
        %v585 = vadd.f32 0.0, %v584
        %v586 = vpop.f32.mrf.mxu0
        %v587 = vadd.f32 0.0, %v586
        %588 = vdwg.mxu0
        %vm589 = vcmask 785408
        %v591 = vsel %vm589, %v319, 0
        %v594 = vsel %vm589, %v320, 0
        %v597 = vsel %vm589, %v321, 0
        %v600 = vsel %vm589, %v322, 0
        %v603 = vsel %vm589, %v323, 0
        %v606 = vsel %vm589, %v324, 0
        %v609 = vsel %vm589, %v325, 0
        %v612 = vsel %vm589, %v326, 0
        %v615 = vsel %vm589, %v327, 0
        %v618 = vsel %vm589, %v328, 0
        %v621 = vsel %vm589, %v329, 0
        %v624 = vsel %vm589, %v330, 0
        %v627 = vsel %vm589, %v331, 0
        %v630 = vsel %vm589, %v332, 0
        %v633 = vsel %vm589, %v333, 0
        %v636 = vsel %vm589, %v334, 0
        %v639 = vsel %vm589, %v335, 0
        %v642 = vsel %vm589, %v336, 0
        %v645 = vsel %vm589, %v337, 0
        %v648 = vsel %vm589, %v338, 0
        %v651 = vsel %vm589, %v339, 0
        %v654 = vsel %vm589, %v340, 0
        %v657 = vsel %vm589, %v341, 0
        %v660 = vsel %vm589, %v342, 0
        %v663 = vsel %vm589, %v343, 0
        %v666 = vsel %vm589, %v344, 0
        %v669 = vsel %vm589, %v345, 0
        %v672 = vsel %vm589, %v346, 0
        %v675 = vsel %vm589, %v347, 0
        %v678 = vsel %vm589, %v348, 0
        %v681 = vsel %vm589, %v349, 0
        %v684 = vsel %vm589, %v350, 0
        %v687 = vsel %vm589, %v351, 0
        %v690 = vsel %vm589, %v352, 0
        %v693 = vsel %vm589, %v353, 0
        %v696 = vsel %vm589, %v354, 0
        %698 = vmatprep.subr.mxu0 0.0
        %699 = vmatpush1.xpose.msra.mxu0 %v648
        %700 = vmatprep.subr.mxu0 0.0
        %701 = vmatpush1.xpose.msra.mxu0 %v645
        %702 = vmatprep.subr.mxu0 0.0
        %703 = vmatpush1.xpose.msra.mxu0 %v642
        %704 = vmatprep.subr.mxu0 0.0
        %705 = vmatpush1.xpose.msra.mxu0 %v639
        %706 = vmatprep.subr.mxu0 0.0
        %707 = vmatpush1.xpose.msra.mxu0 %v636
        %708 = vmatprep.subr.mxu0 0.0
        %709 = vmatpush1.xpose.msra.mxu0 %v633
        %710 = vmatprep.subr.mxu0 0.0
        %711 = vmatpush1.xpose.msra.mxu0 %v630
        %712 = vmatprep.subr.mxu0 0.0
        %713 = vmatpush1.xpose.msra.mxu0 %v627
        %714 = vmatprep.subr.mxu0 0.0
        %715 = vmatpush1.xpose.msra.mxu0 %v624
        %716 = vmatprep.subr.mxu0 0.0
        %717 = vmatpush1.xpose.msra.mxu0 %v621
        %718 = vmatprep.subr.mxu0 0.0
        %719 = vmatpush1.xpose.msra.mxu0 %v618
        %720 = vmatprep.subr.mxu0 0.0
        %721 = vmatpush1.xpose.msra.mxu0 %v615
        %722 = vmatprep.subr.mxu0 0.0
        %723 = vmatpush1.xpose.msra.mxu0 %v612
        %724 = vmatprep.subr.mxu0 0.0
        %725 = vmatpush1.xpose.msra.mxu0 %v609
        %726 = vmatprep.subr.mxu0 0.0
        %727 = vmatpush1.xpose.msra.mxu0 %v606
        %728 = vmatprep.subr.mxu0 0.0
        %729 = vmatpush1.xpose.msra.mxu0 %v603
        %730 = vmatprep.subr.mxu0 0.0
        %731 = vmatpush2.xpose.msra.mxu0 %v696
        %732 = vmatprep.subr.mxu0 0.0
        %733 = vmatpush2.xpose.msra.mxu0 %v693
        %734 = vmatprep.subr.mxu0 0.0
        %735 = vmatpush2.xpose.msra.mxu0 %v690
        %736 = vmatprep.subr.mxu0 0.0
        %737 = vmatpush2.xpose.msra.mxu0 %v687
        %738 = vmatprep.subr.mxu0 0.0
        %739 = vmatpush2.xpose.msra.mxu0 %v684
        %740 = vmatprep.subr.mxu0 0.0
        %741 = vmatpush2.xpose.msra.mxu0 %v681
        %742 = vmatprep.subr.mxu0 0.0
        %743 = vmatpush2.xpose.msra.mxu0 %v678
        %744 = vmatprep.subr.mxu0 0.0
        %745 = vmatpush2.xpose.msra.mxu0 %v675
        %746 = vmatprep.subr.mxu0 0.0
        %747 = vmatpush2.xpose.msra.mxu0 %v672
        %748 = vmatprep.subr.mxu0 0.0
        %749 = vmatpush2.xpose.msra.mxu0 %v669
        %750 = vmatprep.subr.mxu0 0.0
        %751 = vmatpush2.xpose.msra.mxu0 %v666
        %752 = vmatprep.subr.mxu0 0.0
        %753 = vmatpush2.xpose.msra.mxu0 %v663
        %754 = vmatprep.subr.mxu0 0.0
        %755 = vmatpush2.xpose.msra.mxu0 %v660
        %756 = vmatprep.subr.mxu0 0.0
        %757 = vmatpush2.xpose.msra.mxu0 %v657
        %758 = vmatprep.subr.mxu0 0.0
        %759 = vmatpush2.xpose.msra.mxu0 %v654
        %760 = vmatprep.subr.mxu0 0.0
        %761 = vmatpush2.xpose.msra.mxu0 %v651
        %762 = vmatprep.mubr.f32.mxu0 0.0
        %763 = vmatmul.mubr.f32.gmra.mxu0 %v591
        %v764 = vpop.f32.mrf.mxu0
        %v765 = vadd.f32 %v567, %v764
        %v766 = vpop.f32.mrf.mxu0
        %v767 = vadd.f32 %v569, %v766
        %768 = vmatprep.mubr.f32.mxu0 0.0
        %769 = vmatmul.mubr.f32.gmra.mxu0 %v594
        %v770 = vpop.f32.mrf.mxu0
        %v771 = vadd.f32 %v573, %v770
        %v772 = vpop.f32.mrf.mxu0
        %v773 = vadd.f32 %v575, %v772
        %774 = vmatprep.mubr.f32.mxu0 0.0
        %775 = vmatmul.mubr.f32.gmra.mxu0 %v597
        %v776 = vpop.f32.mrf.mxu0
        %v777 = vadd.f32 %v579, %v776
        %v778 = vpop.f32.mrf.mxu0
        %v779 = vadd.f32 %v581, %v778
        %780 = vmatprep.mubr.f32.mxu0 0.0
        %781 = vmatmul.mubr.f32.gmra.mxu0 %v600
        %v782 = vpop.f32.mrf.mxu0
        %v783 = vadd.f32 %v585, %v782
        %v784 = vpop.f32.mrf.mxu0
        %v785 = vadd.f32 %v587, %v784
        %786 = vdwg.mxu0
        %787 = vst [vmem:[%s272] sm:$0xff] %v765
        %788 = vst [vmem:[%s272 + $0x8] sm:$0xff] %v767
        %789 = vst [vmem:[%s272 + $0x10] sm:$0xff] %v771
        %790 = vst [vmem:[%s272 + $0x18] sm:$0xff] %v773
        %791 = vst [vmem:[%s272 + $0x20] sm:$0xff] %v777
        %792 = vst [vmem:[%s272 + $0x28] sm:$0xff] %v779
        %793 = vst [vmem:[%s272 + $0x30] sm:$0xff] %v783
        %794 = vst [vmem:[%s272 + $0x38] sm:$0xff] %v785
        %s795 = smul.u32 %s18, 256
        %v796 = vlaneseq
        %v797 = vand.u32 %v796, 127
        %v798 = vadd.s32 %v797, 128
        %v799 = vstv %s795
        %v800 = vadd.s32 %v799, %v797
        %v801 = vadd.s32 %v799, %v798
        %vm802 = vcmp.lt.s32.totalorder %v800, 1200
        %vm803 = vcmp.lt.s32.totalorder %v801, 1200
        %v804 = vsel %vm802, 1, 0
        %v805 = vsel %vm803, 1, 0
        %vm806 = vcmp.eq.s32.totalorder %v804, 1
        %vm807 = vcmp.eq.s32.totalorder %v805, 1
        %v808 = vsel %vm806, %v765, 0.0
        %v809 = vsel %vm807, %v767, 0.0
        %v810 = vsel %vm806, %v771, 0.0
        %v811 = vsel %vm807, %v773, 0.0
        %v812 = vsel %vm806, %v777, 0.0
        %v813 = vsel %vm807, %v779, 0.0
        %v814 = vsel %vm806, %v783, 0.0
        %v815 = vsel %vm807, %v785, 0.0
        %v816 = vld [vmem:[%s5] sm:$0xff]
        %v817 = vld [vmem:[%s5 + $0x8] sm:$0xff]
        %v818 = vld [vmem:[%s5 + $0x10] sm:$0xff]
        %v819 = vld [vmem:[%s5 + $0x18] sm:$0xff]
        %v820 = vadd.f32 %v808, %v809
        %821 = vadd.xlane.f32.xlu0 %v820
        %v822 = vpop.xlane.xlu0 %821
        %v823 = vadd.f32 %v810, %v811
        %824 = vadd.xlane.f32.xlu0 %v823
        %v825 = vpop.xlane.xlu0 %824
        %v826 = vadd.f32 %v812, %v813
        %827 = vadd.xlane.f32.xlu0 %v826
        %v828 = vpop.xlane.xlu0 %827
        %v829 = vadd.f32 %v814, %v815
        %830 = vadd.xlane.f32.xlu0 %v829
        %v831 = vpop.xlane.xlu0 %830
        %v832 = vadd.f32 %v816, %v822
        %v833 = vadd.f32 %v817, %v825
        %v834 = vadd.f32 %v818, %v828
        %v835 = vadd.f32 %v819, %v831
        %vm836 = vcmask 7168
        %837 = vst.msk [vmem:[%s5] sm:$0xff] %vm836, %v832
        %838 = vst.msk [vmem:[%s5 + $0x8] sm:$0xff] %vm836, %v833
        %839 = vst.msk [vmem:[%s5 + $0x10] sm:$0xff] %vm836, %v834
        %840 = vst.msk [vmem:[%s5 + $0x18] sm:$0xff] %vm836, %v835
        %v841 = vld [vmem:[%s6] sm:$0xff]
        %v842 = vld [vmem:[%s6 + $0x8] sm:$0xff]
        %v843 = vld [vmem:[%s6 + $0x10] sm:$0xff]
        %v844 = vld [vmem:[%s6 + $0x18] sm:$0xff]
        %v845 = vmul.f32 %v808, %v808
        %v846 = vmul.f32 %v809, %v809
        %v847 = vmul.f32 %v810, %v810
        %v848 = vmul.f32 %v811, %v811
        %v849 = vmul.f32 %v812, %v812
        %v850 = vmul.f32 %v813, %v813
        %v851 = vmul.f32 %v814, %v814
        %v852 = vmul.f32 %v815, %v815
        %v853 = vadd.f32 %v845, %v846
        %854 = vadd.xlane.f32.xlu0 %v853
        %v855 = vpop.xlane.xlu0 %854
        %v856 = vadd.f32 %v847, %v848
        %857 = vadd.xlane.f32.xlu0 %v856
        %v858 = vpop.xlane.xlu0 %857
        %v859 = vadd.f32 %v849, %v850
        %860 = vadd.xlane.f32.xlu0 %v859
        %v861 = vpop.xlane.xlu0 %860
        %v862 = vadd.f32 %v851, %v852
        %863 = vadd.xlane.f32.xlu0 %v862
        %v864 = vpop.xlane.xlu0 %863
        %v865 = vadd.f32 %v841, %v855
        %v866 = vadd.f32 %v842, %v858
        %v867 = vadd.f32 %v843, %v861
        %v868 = vadd.f32 %v844, %v864
        %869 = vst.msk [vmem:[%s6] sm:$0xff] %vm836, %v865
        %870 = vst.msk [vmem:[%s6 + $0x8] sm:$0xff] %vm836, %v866
        %871 = vst.msk [vmem:[%s6 + $0x10] sm:$0xff] %vm836, %v867
        %872 = vst.msk [vmem:[%s6 + $0x18] sm:$0xff] %vm836, %v868
        %s873 = sand.u32 %s120, 1
        %s874 = sand.u32 %s120, 1
        %s875 = smul.addr %s874, 64
        %s876 = scalar_lea.vmem [#allocation2], %s875
        // Predicated region
        $region41: #{point_head_forward_single.2} parent=35 // pred_check
          %p877 = pneg %p130
        $region42: #{point_head_forward_single.2} parent=35 // pred_check_branch
          %879 = sbr.rel (%p877) target = $region44
        $region43: #{point_head_forward_single.2} parent=35 // pred_region
          %s880 = smul.u32 2, %s18
          %s881 = smul.addr %s880, 8
          %s882 = scalar_lea.vmem %s4, %s881
          // Predicated region
          $region45: #{point_head_forward_single.2} parent=43 // pred_check
            _
          $region46: #{point_head_forward_single.2} parent=43 // pred_check_branch
            %884 = sbr.rel (0) target = $region48
          $region47: #{point_head_forward_single.2} parent=43 // pred_region
            // Predicated region
            $region49: #{point_head_forward_single.2} parent=47 // pred_check
              _
            $region50: #{point_head_forward_single.2} parent=47 // pred_check_branch
              %886 = sbr.rel (0) target = $region52
            $region51: #{point_head_forward_single.2} parent=47 // pred_region
              loop: start=0, step=1, limit=1
              $region53: #{point_head_forward_single.2} parent=51 // loop_pre_header
                _
              $region54: #{point_head_forward_single.2} parent=51 // loop_header
                %s888 = sphi 0, %s892
                %p889 = scmp.ge.s32.totalorder %s888, 1
                %s893 = sphi %s876, %s876
                %s894 = sphi %s882, %s882
              $region55: #{point_head_forward_single.2} parent=51 // loop_header_branch
                %891 = sbr.rel (%p889) target = $region59
              $region56: #{point_head_forward_single.2} parent=51 // loop_body
                %v895 = vld [vmem:[%s893] sm:$0xff]
                %896 = vst [vmem:[%s894] sm:$0xff] %v895
                %v897 = vld [vmem:[%s893 + $0x8] sm:$0xff]
                %898 = vst [vmem:[%s894 + $0x8] sm:$0xff] %v897
                %v899 = vld [vmem:[%s893 + $0x10] sm:$0xff]
                %900 = vst [vmem:[%s894 + $0x50] sm:$0xff] %v899
                %v901 = vld [vmem:[%s893 + $0x18] sm:$0xff]
                %902 = vst [vmem:[%s894 + $0x58] sm:$0xff] %v901
                %v903 = vld [vmem:[%s893 + $0x20] sm:$0xff]
                %904 = vst [vmem:[%s894 + $0xa0] sm:$0xff] %v903
                %v905 = vld [vmem:[%s893 + $0x28] sm:$0xff]
                %906 = vst [vmem:[%s894 + $0xa8] sm:$0xff] %v905
                %v907 = vld [vmem:[%s893 + $0x30] sm:$0xff]
                %908 = vst [vmem:[%s894 + $0xf0] sm:$0xff] %v907
                %v909 = vld [vmem:[%s893 + $0x38] sm:$0xff]
                %910 = vst [vmem:[%s894 + $0xf8] sm:$0xff] %v909
              $region57: #{point_head_forward_single.2} parent=51 // loop_footer
                %s892 = sadd.s32 1, %s888
              $region58: #{point_head_forward_single.2} parent=51 // loop_footer_branch
                %887 = sbr.rel target = $region54
              $region59: #{point_head_forward_single.2} parent=51 // loop_exit
                _
            $region52: #{point_head_forward_single.2} parent=47 // pred_fallthru
              _
            // Predicated region
            $region60: #{point_head_forward_single.2} parent=47 // pred_check
              _
            $region61: #{point_head_forward_single.2} parent=47 // pred_check_branch
              %912 = sbr.rel target = $region63
            $region62: #{point_head_forward_single.2} parent=47 // pred_region
              _
            $region63: #{point_head_forward_single.2} parent=47 // pred_fallthru
              _
          $region48: #{point_head_forward_single.2} parent=43 // pred_fallthru
            _
          %913 = vnop
        $region44: #{point_head_forward_single.2} parent=35 // pred_fallthru
          _
        // Predicated region
        $region64: #{point_head_forward_single.2} parent=35 // pred_check
          %p914 = pneg %p151
        $region65: #{point_head_forward_single.2} parent=35 // pred_check_branch
          %916 = sbr.rel (%p914) target = $region67
        $region66: #{point_head_forward_single.2} parent=35 // pred_region
          _
        $region67: #{point_head_forward_single.2} parent=35 // pred_fallthru
          _
        // Predicated region
        $region68: #{point_head_forward_single.2} parent=35 // pred_check
          %p917 = pneg %p172
        $region69: #{point_head_forward_single.2} parent=35 // pred_check_branch
          %919 = sbr.rel (%p917) target = $region71
        $region70: #{point_head_forward_single.2} parent=35 // pred_region
          _
        $region71: #{point_head_forward_single.2} parent=35 // pred_fallthru
          _
        // Predicated region
        $region72: #{point_head_forward_single.2} parent=35 // pred_check
          %p920 = pneg %p151
        $region73: #{point_head_forward_single.2} parent=35 // pred_check_branch
          %922 = sbr.rel (%p920) target = $region75
        $region74: #{point_head_forward_single.2} parent=35 // pred_region
          _
        $region75: #{point_head_forward_single.2} parent=35 // pred_fallthru
          _
        // Predicated region
        $region76: #{point_head_forward_single.2} parent=35 // pred_check
          %p923 = pneg %p172
        $region77: #{point_head_forward_single.2} parent=35 // pred_check_branch
          %925 = sbr.rel (%p923) target = $region79
        $region78: #{point_head_forward_single.2} parent=35 // pred_region
          _
        $region79: #{point_head_forward_single.2} parent=35 // pred_fallthru
          _
      $region36: #{point_head_forward_single.2} parent=5 // pred_fallthru
        _
      %p926 = scmp.le.s32.totalorder 2, %s13
      // Predicated region
      $region80: #{point_head_forward_single.2} parent=5 // pred_check
        %p927 = pneg %p926
      $region81: #{point_head_forward_single.2} parent=5 // pred_check_branch
        %929 = sbr.rel (%p927) target = $region83
      $region82: #{point_head_forward_single.2} parent=5 // pred_region
        %s930 = ssub.s32 %s13, 2
        // Predicated region
        $region84: #{point_head_forward_single.2} parent=82 // pred_check
          %p931 = pneg %p136
        $region85: #{point_head_forward_single.2} parent=82 // pred_check_branch
          %933 = sbr.rel (%p931) target = $region87
        $region86: #{point_head_forward_single.2} parent=82 // pred_region
          %s934 = sand.u32 %s121, 1
          %s935 = sand.u32 %s121, 1
          %s936 = smul.addr %s935, 64
          %s937 = scalar_lea.vmem [#allocation2], %s936
        $region87: #{point_head_forward_single.2} parent=82 // pred_fallthru
          _
      $region83: #{point_head_forward_single.2} parent=5 // pred_fallthru
        _
    $region6: #{point_head_forward_single.2} parent=1 // loop_footer
      %s17 = sadd.s32 1, %s13
    $region7: #{point_head_forward_single.2} parent=1 // loop_footer_branch
      %12 = sbr.rel target = $region3
    $region8: #{point_head_forward_single.2} parent=1 // loop_exit
      _

</llo_original>
